<compile_context>
chip_gen: v6e
topology: v6e:2x2x1
jax: 0.10.0
libtpu: 0.0.40
codegen_flags: <defaults>
</compile_context>

<pallas_src>
import functools
import math

import jax
import jax.numpy as jnp
from jax.experimental import pallas as pl
from jax.experimental.pallas import tpu as pltpu


# --------------------------- tiled linear kernel ----------------------------

def _pick_tile(dim, preferred):
    """Largest convenient tile: full dim if small/odd, else a 128-multiple."""
    if dim <= preferred:
        return dim
    for cand in (preferred, 512, 256, 128):
        if cand <= dim and dim % cand == 0:
            return cand
    return dim


def _linear_kernel(x_ref, wt_ref, b_ref, o_ref, acc_ref, *, mm_dtype):
    @pl.when(pl.program_id(2) == 0)
    def _():
        acc_ref[...] = jnp.zeros_like(acc_ref)

    acc_ref[...] += jnp.dot(x_ref[...].astype(mm_dtype), wt_ref[...],
                            preferred_element_type=jnp.float32)

    @pl.when(pl.program_id(2) == pl.num_programs(2) - 1)
    def _():
        o_ref[...] = (acc_ref[...] + b_ref[...]).astype(o_ref.dtype)


def linear_pallas(x2d, wt, b2d, *, tm=256, tn=256, tk=512):
    """x2d: [M, K] f32; wt: [K, N] pre-transposed; b2d: [1, N] f32 -> [M, N] f32."""
    M, K = x2d.shape
    N = wt.shape[1]
    tm, tn, tk = _pick_tile(M, tm), _pick_tile(N, tn), _pick_tile(K, tk)
    kern = functools.partial(_linear_kernel, mm_dtype=wt.dtype)
    return pl.pallas_call(
        kern,
        out_shape=jax.ShapeDtypeStruct((M, N), jnp.float32),
        grid=(M // tm, N // tn, K // tk),
        in_specs=[pl.BlockSpec((tm, tk), lambda i, j, k: (i, k)),
                  pl.BlockSpec((tk, tn), lambda i, j, k: (k, j)),
                  pl.BlockSpec((1, tn), lambda i, j, k: (0, j))],
        out_specs=pl.BlockSpec((tm, tn), lambda i, j, k: (i, j)),
        scratch_shapes=[pltpu.VMEM((tm, tn), jnp.float32)],
        compiler_params=pltpu.CompilerParams(
            dimension_semantics=("parallel", "parallel", "arbitrary")),
    )(x2d, wt, b2d)


# ------------------------- fused encoder-layer kernel -----------------------

def _encoder_layer_kernel(x_ref, cos_ref, sina_ref, sinb_ref,
                          wqkv_ref, bqkv_ref, wo3_ref, bo_ref,
                          w1_ref, b1_ref, w2_ref, b2_ref,
                          g1_ref, be1_ref, g2_ref, be2_ref,
                          o_ref, *, num_heads, head_dim, mm_dtype):
    H, hd = num_heads, head_dim
    x = x_ref[0]                                  # [S, D] f32
    S, D = x.shape

    cos = cos_ref[...]                            # [S, D] (head-tiled)
    sin_a = sina_ref[...]                         # sign-folded, even lanes only
    sin_b = sinb_ref[...]                         # sign-folded, odd lanes only

    # Fused qkv projection. 1/sqrt(hd) is already folded into the q columns.
    qkv = jnp.dot(x.astype(mm_dtype), wqkv_ref[...],
                  preferred_element_type=jnp.float32) + bqkv_ref[...]   # [S, 3D]

    def rope(t):
        # interleaved RoPE on the full [S, D] slab:
        #   even j: t[j]*cos[j] - t[j+1]*sin[j]
        #   odd  j: t[j]*cos[j] + t[j-1]*sin[j]
        return (t * cos
                + jnp.roll(t, -1, axis=-1) * sin_a
                + jnp.roll(t, 1, axis=-1) * sin_b)

    q = rope(qkv[:, :D])
    k = rope(qkv[:, D:2 * D])
    v = qkv[:, 2 * D:]

    def split_heads(t):                            # [S, D] -> [H, S, hd]
        return jnp.stack([t[:, h * hd:(h + 1) * hd] for h in range(H)], axis=0)

    qh = split_heads(q).astype(mm_dtype)
    kh = split_heads(k).astype(mm_dtype)
    vh = split_heads(v).astype(mm_dtype)

    # One batched MXU call per attention matmul (batch dimension = heads).
    s = jax.lax.dot_general(qh, kh, (((2,), (2,)), ((0,), (0,))),
                            preferred_element_type=jnp.float32)          # [H, S, S]
    s = s - jnp.max(s, axis=-1, keepdims=True)
    e = jnp.exp(s)
    p = e * pl.reciprocal(jnp.sum(e, axis=-1, keepdims=True), approx=True)
    a = jax.lax.dot_general(p.astype(mm_dtype), vh, (((2,), (1,)), ((0,), (0,))),
                            preferred_element_type=jnp.float32)          # [H, S, hd]

    # Output projection with the head-merge folded in:
    #   attn = sum_h a[h] @ wo3[h] + bo      (no concat / transpose needed)
    attn = jax.lax.dot_general(a.astype(mm_dtype), wo3_ref[...],
                               (((2,), (1,)), ((0,), (0,))),
                               preferred_element_type=jnp.float32)       # [H, S, D]
    attn = jnp.sum(attn, axis=0) + bo_ref[...]                           # [S, D]

    def layer_norm(t, g, b):
        mu = jnp.mean(t, axis=-1, keepdims=True)
        var = jnp.mean(jnp.square(t - mu), axis=-1, keepdims=True)
        return (t - mu) * jax.lax.rsqrt(var + 1e-5) * g + b

    h1 = layer_norm(x + attn, g1_ref[...], be1_ref[...])

    ff = jnp.maximum(
        jnp.dot(h1.astype(mm_dtype), w1_ref[...],
                preferred_element_type=jnp.float32) + b1_ref[...], 0.0)
    ff = jnp.dot(ff.astype(mm_dtype), w2_ref[...],
                 preferred_element_type=jnp.float32) + b2_ref[...]

    o_ref[0] = layer_norm(h1 + ff, g2_ref[...], be2_ref[...])


def encoder_layer_pallas(x, rope_tables, lp, num_heads):
    B, S, D = x.shape
    head_dim = D // num_heads
    cos, sin_a, sin_b = rope_tables
    kern = functools.partial(_encoder_layer_kernel, num_heads=num_heads,
                             head_dim=head_dim, mm_dtype=lp["wqkv"].dtype)

    operands = (x, cos, sin_a, sin_b,
                lp["wqkv"], lp["bqkv"], lp["wo"], lp["bo"],
                lp["w1"], lp["b1"], lp["w2"], lp["b2"],
                lp["g1"], lp["be1"], lp["g2"], lp["be2"])

    def full_spec(shape):
        n = len(shape)
        # TODO(synk): single-buffer these grid-invariant weights
        # (pipeline_mode=pl.Buffered(1)) to halve their VMEM footprint.
        return pl.BlockSpec(shape, lambda b, n=n: (0,) * n)

    in_specs = [pl.BlockSpec((1, S, D), lambda b: (b, 0, 0))]
    in_specs += [full_spec(op.shape) for op in operands[1:]]

    return pl.pallas_call(
        kern,
        out_shape=jax.ShapeDtypeStruct((B, S, D), jnp.float32),
        grid=(B,),
        in_specs=in_specs,
        out_specs=pl.BlockSpec((1, S, D), lambda b: (b, 0, 0)),
        compiler_params=pltpu.CompilerParams(dimension_semantics=("parallel",)),
    )(*operands)


# ------------------------------ model glue ----------------------------------

def _rotary_cos_sin(seq_len, dim):
    inv_freq = 1.0 / (10000.0 ** (jnp.arange(0, dim, 2, dtype=jnp.float32) / dim))
    t = jnp.arange(seq_len, dtype=jnp.float32)
    freqs = t[:, None] * inv_freq[None, :]
    emb = jnp.concatenate([freqs, freqs], axis=-1)            # [S, dim]
    return jnp.cos(emb), jnp.sin(emb)


def get_rotary_tables(seq_len, head_dim, num_heads):
    """Sign-folded, head-tiled RoPE tables of shape [S, D]."""
    cos, sin = _rotary_cos_sin(seq_len, head_dim)
    even = (jnp.arange(head_dim) % 2) == 0
    sin_a = jnp.where(even, -sin, 0.0)     # multiplies roll(t, -1)
    sin_b = jnp.where(even, 0.0, sin)      # multiplies roll(t, +1)
    tile = lambda a: jnp.tile(a, (1, num_heads))
    return tile(cos), tile(sin_a), tile(sin_b)


def init_params(key, inp_size, d_model, num_heads, num_layers, outp_size, dff):
    """PyTorch-layout parameters (Linear weights are [out_features, in_features])."""
    def lin_init(k, out_f, in_f):
        k1, k2 = jax.random.split(k)
        bound = 1.0 / math.sqrt(in_f)
        w = jax.random.uniform(k1, (out_f, in_f), jnp.float32, -bound, bound)
        b = jax.random.uniform(k2, (out_f,), jnp.float32, -bound, bound)
        return w, b

    keys = jax.random.split(key, 2 + num_layers)
    params = {"input": lin_init(keys[0], d_model, inp_size),
              "output": lin_init(keys[1], outp_size, d_model),
              "layers": []}
    for i in range(num_layers):
        ks = jax.random.split(keys[2 + i], 4)
        wqkv, bqkv = lin_init(ks[0], 3 * d_model, d_model)
        wo, bo = lin_init(ks[1], d_model, d_model)
        w1, b1 = lin_init(ks[2], dff, d_model)
        w2, b2 = lin_init(ks[3], d_model, dff)
        params["layers"].append(dict(
            wqkv=wqkv, bqkv=bqkv, wo=wo, bo=bo, w1=w1, b1=b1, w2=w2, b2=b2,
            g1=jnp.ones((d_model,), jnp.float32),
            be1=jnp.zeros((d_model,), jnp.float32),
            g2=jnp.ones((d_model,), jnp.float32),
            be2=jnp.zeros((d_model,), jnp.float32)))
    return params


def prepare_pallas_params(params, num_heads, matmul_dtype=jnp.float32):
    """One-time weight prep: transpose to [in,out], fold 1/sqrt(hd) into the q
    columns, reshape wo to [H, hd, D], reshape biases to (1, N), cast matmul
    weights to `matmul_dtype` (bf16 recommended on v6e/v7x)."""
    def prep_linear(wb):
        w, b = wb
        return w.T.astype(matmul_dtype), b.reshape(1, -1).astype(jnp.float32)

    prepared = {"input": prep_linear(params["input"]),
                "output": prep_linear(params["output"]),
                "layers": []}
    for lp in params["layers"]:
        D = lp["wo"].shape[0]
        hd = D // num_heads
        scale = 1.0 / math.sqrt(hd)
        col_scale = jnp.concatenate(
            [jnp.full((D,), scale, jnp.float32), jnp.ones((2 * D,), jnp.float32)])
        wqkv_t = (lp["wqkv"].T * col_scale[None, :]).astype(matmul_dtype)
        bqkv = (lp["bqkv"] * col_scale).reshape(1, -1).astype(jnp.float32)
        wo3 = lp["wo"].T.reshape(num_heads, hd, D).astype(matmul_dtype)
        prepared["layers"].append(dict(
            wqkv=wqkv_t, bqkv=bqkv,
            wo=wo3, bo=lp["bo"].reshape(1, -1),
            w1=lp["w1"].T.astype(matmul_dtype), b1=lp["b1"].reshape(1, -1),
            w2=lp["w2"].T.astype(matmul_dtype), b2=lp["b2"].reshape(1, -1),
            g1=lp["g1"].reshape(1, -1), be1=lp["be1"].reshape(1, -1),
            g2=lp["g2"].reshape(1, -1), be2=lp["be2"].reshape(1, -1)))
    return prepared


def transformer_forward_pallas(x, prepared, num_heads):
    B, S, inp = x.shape
    wt_in, b_in = prepared["input"]
    d_model = wt_in.shape[1]
    h = linear_pallas(x.reshape(B * S, inp), wt_in, b_in).reshape(B, S, d_model)
    rope_tables = get_rotary_tables(S, d_model // num_heads, num_heads)
    for lp in prepared["layers"]:
        h = encoder_layer_pallas(h, rope_tables, lp, num_heads)
    wt_out, b_out = prepared["output"]
    out = linear_pallas(h.reshape(B * S, d_model), wt_out, b_out)
    return out.reshape(B, S, wt_out.shape[1])


# ----------------------- pure-JAX reference (checking) ----------------------

def _rotate_every_two_ref(x):
    x1 = x[..., ::2]
    x2 = x[..., 1::2]
    return jnp.stack((-x2, x1), axis=-1).reshape(x.shape)


def reference_forward(x, params, num_heads):
    def lin(t, wb):
        w, b = wb
        return t @ w.T + b

    def ln(t, g, b):
        mu = t.mean(-1, keepdims=True)
        var = ((t - mu) ** 2).mean(-1, keepdims=True)
        return (t - mu) / jnp.sqrt(var + 1e-5) * g + b

    h = lin(x, params["input"])
    B, S, D = h.shape
    hd = D // num_heads
    cos, sin = _rotary_cos_sin(S, hd)
    cos = cos[None, None]
    sin = sin[None, None]
    for lp in params["layers"]:
        qkv = lin(h, (lp["wqkv"], lp["bqkv"])).reshape(B, S, 3, num_heads, hd)
        qkv = jnp.transpose(qkv, (2, 0, 3, 1, 4))
        q, k, v = qkv[0], qkv[1], qkv[2]
        q = q * cos + _rotate_every_two_ref(q) * sin
        k = k * cos + _rotate_every_two_ref(k) * sin
        s = (q @ jnp.swapaxes(k, -1, -2)) / math.sqrt(hd)
        p = jax.nn.softmax(s, axis=-1)
        a = jnp.transpose(p @ v, (0, 2, 1, 3)).reshape(B, S, D)
        a = lin(a, (lp["wo"], lp["bo"]))
        h = ln(h + a, lp["g1"], lp["be1"])
        ff = lin(jax.nn.relu(lin(h, (lp["w1"], lp["b1"]))), (lp["w2"], lp["b2"]))
        h = ln(h + ff, lp["g2"], lp["be2"])
    return lin(h, params["output"])


# ---------------------------------- main ------------------------------------

if __name__ == "__main__":
    key = jax.random.PRNGKey(0)
    kx, kp = jax.random.split(key)

    B, S = 2, 8
    inp_size, d_model, num_heads, num_layers, outp_size = 8, 32, 4, 2, 8
    dim_feedforward = 64

    x = jax.random.normal(kx, (B, S, inp_size), dtype=jnp.float32)
    params = init_params(kp, inp_size, d_model, num_heads, num_layers,
                         outp_size, dim_feedforward)
    ref = reference_forward(x, params, num_heads)

    fwd = jax.jit(transformer_forward_pallas, static_argnums=2)

    # f32 matmul path (tight correctness check).
    p_f32 = prepare_pallas_params(params, num_heads, jnp.float32)
    out_f32 = jax.block_until_ready(fwd(x, p_f32, num_heads))
    assert out_f32.shape == (B, S, outp_size)
    err_f32 = float(jnp.max(jnp.abs(out_f32 - ref)))
    assert err_f32 < 5e-2, f"f32 path max abs err {err_f32}"

    # bf16 matmul-operand path (recommended on v6e / v7x) -- looser check.
    p_bf16 = prepare_pallas_params(params, num_heads, jnp.bfloat16)
    out_bf16 = jax.block_until_ready(fwd(x, p_bf16, num_heads))
    err_bf16 = float(jnp.max(jnp.abs(out_bf16 - ref)))
    assert err_bf16 < 2.5e-1, f"bf16 path max abs err {err_bf16}"

    print("KERNEL_OK")
</pallas_src>

<mosaic_0001>
module attributes {stable_mosaic.version = 11 : i64} {
  func.func @_linear_kernel(%arg0: i32, %arg1: i32, %arg2: i32, %arg3: memref<16x8xf32, #tpu.memory_space<vmem>>, %arg4: memref<8x32xf32, #tpu.memory_space<vmem>>, %arg5: memref<1x32xf32, #tpu.memory_space<vmem>>, %arg6: memref<16x32xf32, #tpu.memory_space<vmem>>, %arg7: memref<16x32xf32, #tpu.memory_space<vmem>>) attributes {dimension_semantics = [#tpu.dimension_semantics<parallel>, #tpu.dimension_semantics<parallel>, #tpu.dimension_semantics<arbitrary>], iteration_bounds = array<i64: 1, 1, 1>, scalar_prefetch = 0 : i64, scratch_operands = 1 : i64, tpu.core_type = #tpu.core_type<tc>, window_params = [{transform_indices = @transform_0, window_bounds = array<i64: 16, 8>}, {transform_indices = @transform_1, window_bounds = array<i64: 8, 32>}, {transform_indices = @transform_2, window_bounds = array<i64: 1, 32>}, {transform_indices = @transform_3, window_bounds = array<i64: 16, 32>}]} {
    %c0_i32 = arith.constant 0 : i32
    %0 = arith.cmpi eq, %arg2, %c0_i32 : i32
    %1 = arith.extui %0 : i1 to i32
    %c0_i32_0 = arith.constant 0 : i32
    %2 = arith.cmpi ne, %1, %c0_i32_0 : i32
    scf.if %2 {
      %cst_10 = arith.constant 0.000000e+00 : f32
      %12 = vector.broadcast %cst_10 : f32 to vector<16x32xf32>
      %c0_11 = arith.constant 0 : index
      %c0_12 = arith.constant 0 : index
      %13 = vector.load %arg7[%c0_11, %c0_12] : memref<16x32xf32, #tpu.memory_space<vmem>>, vector<16x32xf32>
      tpu.vector_store %arg7[%c0_11, %c0_12], %12 {strides = array<i32>} : memref<16x32xf32, #tpu.memory_space<vmem>>, vector<16x32xf32>,
    } else {
    }
    %c0 = arith.constant 0 : index
    %c0_1 = arith.constant 0 : index
    %3 = vector.load %arg7[%c0, %c0_1] : memref<16x32xf32, #tpu.memory_space<vmem>>, vector<16x32xf32>
    %c0_2 = arith.constant 0 : index
    %c0_3 = arith.constant 0 : index
    %4 = vector.load %arg3[%c0_2, %c0_3] : memref<16x8xf32, #tpu.memory_space<vmem>>, vector<16x8xf32>
    %c0_4 = arith.constant 0 : index
    %c0_5 = arith.constant 0 : index
    %5 = vector.load %arg4[%c0_4, %c0_5] : memref<8x32xf32, #tpu.memory_space<vmem>>, vector<8x32xf32>
    %cst = arith.constant dense<0.000000e+00> : vector<16x32xf32>
    %6 = tpu.matmul %4, %5, %cst {dimension_numbers = #tpu.dot_dimension_numbers<[1], [0], [0], [1], [0, 0, 1, 1], [], []>} : vector<16x8xf32>, vector<8x32xf32>, vector<16x32xf32> -> vector<16x32xf32>
    %7 = arith.addf %3, %6 : vector<16x32xf32>
    %c0_6 = arith.constant 0 : index
    %c0_7 = arith.constant 0 : index
    %8 = vector.load %arg7[%c0_6, %c0_7] : memref<16x32xf32, #tpu.memory_space<vmem>>, vector<16x32xf32>
    tpu.vector_store %arg7[%c0_6, %c0_7], %7 {strides = array<i32>} : memref<16x32xf32, #tpu.memory_space<vmem>>, vector<16x32xf32>,
    %c0_i32_8 = arith.constant 0 : i32
    %9 = arith.cmpi eq, %arg2, %c0_i32_8 : i32
    %10 = arith.extui %9 : i1 to i32
    %c0_i32_9 = arith.constant 0 : i32
    %11 = arith.cmpi ne, %10, %c0_i32_9 : i32
    scf.if %11 {
      %c0_10 = arith.constant 0 : index
      %c0_11 = arith.constant 0 : index
      %12 = vector.load %arg7[%c0_10, %c0_11] : memref<16x32xf32, #tpu.memory_space<vmem>>, vector<16x32xf32>
      %c0_12 = arith.constant 0 : index
      %c0_13 = arith.constant 0 : index
      %13 = vector.load %arg5[%c0_12, %c0_13] : memref<1x32xf32, #tpu.memory_space<vmem>>, vector<1x32xf32>
      %14 = vector.broadcast %13 : vector<1x32xf32> to vector<16x32xf32>
      %15 = arith.addf %12, %14 : vector<16x32xf32>
      %c0_14 = arith.constant 0 : index
      %c0_15 = arith.constant 0 : index
      %16 = vector.load %arg6[%c0_14, %c0_15] : memref<16x32xf32, #tpu.memory_space<vmem>>, vector<16x32xf32>
      tpu.vector_store %arg6[%c0_14, %c0_15], %15 {strides = array<i32>} : memref<16x32xf32, #tpu.memory_space<vmem>>, vector<16x32xf32>,
    } else {
    }
    return
  }
  func.func @transform_0(%arg0: i32, %arg1: i32, %arg2: i32) -> (i32, i32) {
    %c0_i32 = arith.constant 0 : i32
    return %arg0, %arg2 : i32, i32
  }
  func.func @transform_1(%arg0: i32, %arg1: i32, %arg2: i32) -> (i32, i32) {
    %c0_i32 = arith.constant 0 : i32
    return %arg2, %arg1 : i32, i32
  }
  func.func @transform_2(%arg0: i32, %arg1: i32, %arg2: i32) -> (i32, i32) {
    %c0_i32 = arith.constant 0 : i32
    %c0_i32_0 = arith.constant 0 : i32
    return %c0_i32, %arg1 : i32, i32
  }
  func.func @transform_3(%arg0: i32, %arg1: i32, %arg2: i32) -> (i32, i32) {
    %c0_i32 = arith.constant 0 : i32
    return %arg0, %arg1 : i32, i32
  }
}

module attributes {stable_mosaic.version = 11 : i64} {
  func.func @_linear_kernel(%arg0: i32, %arg1: i32, %arg2: i32, %arg3: memref<16x32xf32, #tpu.memory_space<vmem>>, %arg4: memref<32x8xf32, #tpu.memory_space<vmem>>, %arg5: memref<1x8xf32, #tpu.memory_space<vmem>>, %arg6: memref<16x8xf32, #tpu.memory_space<vmem>>, %arg7: memref<16x8xf32, #tpu.memory_space<vmem>>) attributes {dimension_semantics = [#tpu.dimension_semantics<parallel>, #tpu.dimension_semantics<parallel>, #tpu.dimension_semantics<arbitrary>], iteration_bounds = array<i64: 1, 1, 1>, scalar_prefetch = 0 : i64, scratch_operands = 1 : i64, tpu.core_type = #tpu.core_type<tc>, window_params = [{transform_indices = @transform_0, window_bounds = array<i64: 16, 32>}, {transform_indices = @transform_1, window_bounds = array<i64: 32, 8>}, {transform_indices = @transform_2, window_bounds = array<i64: 1, 8>}, {transform_indices = @transform_3, window_bounds = array<i64: 16, 8>}]} {
    %c0_i32 = arith.constant 0 : i32
    %0 = arith.cmpi eq, %arg2, %c0_i32 : i32
    %1 = arith.extui %0 : i1 to i32
    %c0_i32_0 = arith.constant 0 : i32
    %2 = arith.cmpi ne, %1, %c0_i32_0 : i32
    scf.if %2 {
      %cst_10 = arith.constant 0.000000e+00 : f32
      %12 = vector.broadcast %cst_10 : f32 to vector<16x8xf32>
      %c0_11 = arith.constant 0 : index
      %c0_12 = arith.constant 0 : index
      %13 = vector.load %arg7[%c0_11, %c0_12] : memref<16x8xf32, #tpu.memory_space<vmem>>, vector<16x8xf32>
      tpu.vector_store %arg7[%c0_11, %c0_12], %12 {strides = array<i32>} : memref<16x8xf32, #tpu.memory_space<vmem>>, vector<16x8xf32>,
    } else {
    }
    %c0 = arith.constant 0 : index
    %c0_1 = arith.constant 0 : index
    %3 = vector.load %arg7[%c0, %c0_1] : memref<16x8xf32, #tpu.memory_space<vmem>>, vector<16x8xf32>
    %c0_2 = arith.constant 0 : index
    %c0_3 = arith.constant 0 : index
    %4 = vector.load %arg3[%c0_2, %c0_3] : memref<16x32xf32, #tpu.memory_space<vmem>>, vector<16x32xf32>
    %c0_4 = arith.constant 0 : index
    %c0_5 = arith.constant 0 : index
    %5 = vector.load %arg4[%c0_4, %c0_5] : memref<32x8xf32, #tpu.memory_space<vmem>>, vector<32x8xf32>
    %cst = arith.constant dense<0.000000e+00> : vector<16x8xf32>
    %6 = tpu.matmul %4, %5, %cst {dimension_numbers = #tpu.dot_dimension_numbers<[1], [0], [0], [1], [0, 0, 1, 1], [], []>} : vector<16x32xf32>, vector<32x8xf32>, vector<16x8xf32> -> vector<16x8xf32>
    %7 = arith.addf %3, %6 : vector<16x8xf32>
    %c0_6 = arith.constant 0 : index
    %c0_7 = arith.constant 0 : index
    %8 = vector.load %arg7[%c0_6, %c0_7] : memref<16x8xf32, #tpu.memory_space<vmem>>, vector<16x8xf32>
    tpu.vector_store %arg7[%c0_6, %c0_7], %7 {strides = array<i32>} : memref<16x8xf32, #tpu.memory_space<vmem>>, vector<16x8xf32>,
    %c0_i32_8 = arith.constant 0 : i32
    %9 = arith.cmpi eq, %arg2, %c0_i32_8 : i32
    %10 = arith.extui %9 : i1 to i32
    %c0_i32_9 = arith.constant 0 : i32
    %11 = arith.cmpi ne, %10, %c0_i32_9 : i32
    scf.if %11 {
      %c0_10 = arith.constant 0 : index
      %c0_11 = arith.constant 0 : index
      %12 = vector.load %arg7[%c0_10, %c0_11] : memref<16x8xf32, #tpu.memory_space<vmem>>, vector<16x8xf32>
      %c0_12 = arith.constant 0 : index
      %c0_13 = arith.constant 0 : index
      %13 = vector.load %arg5[%c0_12, %c0_13] : memref<1x8xf32, #tpu.memory_space<vmem>>, vector<1x8xf32>
      %14 = vector.broadcast %13 : vector<1x8xf32> to vector<16x8xf32>
      %15 = arith.addf %12, %14 : vector<16x8xf32>
      %c0_14 = arith.constant 0 : index
      %c0_15 = arith.constant 0 : index
      %16 = vector.load %arg6[%c0_14, %c0_15] : memref<16x8xf32, #tpu.memory_space<vmem>>, vector<16x8xf32>
      tpu.vector_store %arg6[%c0_14, %c0_15], %15 {strides = array<i32>} : memref<16x8xf32, #tpu.memory_space<vmem>>, vector<16x8xf32>,
    } else {
    }
    return
  }
  func.func @transform_0(%arg0: i32, %arg1: i32, %arg2: i32) -> (i32, i32) {
    %c0_i32 = arith.constant 0 : i32
    return %arg0, %arg2 : i32, i32
  }
  func.func @transform_1(%arg0: i32, %arg1: i32, %arg2: i32) -> (i32, i32) {
    %c0_i32 = arith.constant 0 : i32
    return %arg2, %arg1 : i32, i32
  }
  func.func @transform_2(%arg0: i32, %arg1: i32, %arg2: i32) -> (i32, i32) {
    %c0_i32 = arith.constant 0 : i32
    %c0_i32_0 = arith.constant 0 : i32
    return %c0_i32, %arg1 : i32, i32
  }
  func.func @transform_3(%arg0: i32, %arg1: i32, %arg2: i32) -> (i32, i32) {
    %c0_i32 = arith.constant 0 : i32
    return %arg0, %arg1 : i32, i32
  }
}

module attributes {stable_mosaic.version = 11 : i64} {
  func.func @_encoder_layer_kernel(%arg0: i32, %arg1: memref<1x8x32xf32, #tpu.memory_space<vmem>>, %arg2: memref<8x32xf32, #tpu.memory_space<vmem>>, %arg3: memref<8x32xf32, #tpu.memory_space<vmem>>, %arg4: memref<8x32xf32, #tpu.memory_space<vmem>>, %arg5: memref<32x96xf32, #tpu.memory_space<vmem>>, %arg6: memref<1x96xf32, #tpu.memory_space<vmem>>, %arg7: memref<4x8x32xf32, #tpu.memory_space<vmem>>, %arg8: memref<1x32xf32, #tpu.memory_space<vmem>>, %arg9: memref<32x64xf32, #tpu.memory_space<vmem>>, %arg10: memref<1x64xf32, #tpu.memory_space<vmem>>, %arg11: memref<64x32xf32, #tpu.memory_space<vmem>>, %arg12: memref<1x32xf32, #tpu.memory_space<vmem>>, %arg13: memref<1x32xf32, #tpu.memory_space<vmem>>, %arg14: memref<1x32xf32, #tpu.memory_space<vmem>>, %arg15: memref<1x32xf32, #tpu.memory_space<vmem>>, %arg16: memref<1x32xf32, #tpu.memory_space<vmem>>, %arg17: memref<1x8x32xf32, #tpu.memory_space<vmem>>) attributes {dimension_semantics = [#tpu.dimension_semantics<parallel>], iteration_bounds = array<i64: 2>, scalar_prefetch = 0 : i64, scratch_operands = 0 : i64, tpu.core_type = #tpu.core_type<tc>, window_params = [{transform_indices = @transform_0, window_bounds = array<i64: 1, 8, 32>}, {pipeline_mode = #tpu.pipeline_mode<synchronous>, transform_indices = @transform_1, window_bounds = array<i64: 8, 32>}, {pipeline_mode = #tpu.pipeline_mode<synchronous>, transform_indices = @transform_2, window_bounds = array<i64: 8, 32>}, {pipeline_mode = #tpu.pipeline_mode<synchronous>, transform_indices = @transform_3, window_bounds = array<i64: 8, 32>}, {pipeline_mode = #tpu.pipeline_mode<synchronous>, transform_indices = @transform_4, window_bounds = array<i64: 32, 96>}, {pipeline_mode = #tpu.pipeline_mode<synchronous>, transform_indices = @transform_5, window_bounds = array<i64: 1, 96>}, {pipeline_mode = #tpu.pipeline_mode<synchronous>, transform_indices = @transform_6, window_bounds = array<i64: 4, 8, 32>}, {pipeline_mode = #tpu.pipeline_mode<synchronous>, transform_indices = @transform_7, window_bounds = array<i64: 1, 32>}, {pipeline_mode = #tpu.pipeline_mode<synchronous>, transform_indices = @transform_8, window_bounds = array<i64: 32, 64>}, {pipeline_mode = #tpu.pipeline_mode<synchronous>, transform_indices = @transform_9, window_bounds = array<i64: 1, 64>}, {pipeline_mode = #tpu.pipeline_mode<synchronous>, transform_indices = @transform_10, window_bounds = array<i64: 64, 32>}, {pipeline_mode = #tpu.pipeline_mode<synchronous>, transform_indices = @transform_11, window_bounds = array<i64: 1, 32>}, {pipeline_mode = #tpu.pipeline_mode<synchronous>, transform_indices = @transform_12, window_bounds = array<i64: 1, 32>}, {pipeline_mode = #tpu.pipeline_mode<synchronous>, transform_indices = @transform_13, window_bounds = array<i64: 1, 32>}, {pipeline_mode = #tpu.pipeline_mode<synchronous>, transform_indices = @transform_14, window_bounds = array<i64: 1, 32>}, {pipeline_mode = #tpu.pipeline_mode<synchronous>, transform_indices = @transform_15, window_bounds = array<i64: 1, 32>}, {transform_indices = @transform_16, window_bounds = array<i64: 1, 8, 32>}]} {
    %c0 = arith.constant 0 : index
    %c0_0 = arith.constant 0 : index
    %c0_1 = arith.constant 0 : index
    %0 = vector.load %arg1[%c0, %c0_0, %c0_1] : memref<1x8x32xf32, #tpu.memory_space<vmem>>, vector<1x8x32xf32>
    %1 = vector.shape_cast %0 : vector<1x8x32xf32> to vector<8x32xf32>
    %c0_2 = arith.constant 0 : index
    %c0_3 = arith.constant 0 : index
    %2 = vector.load %arg2[%c0_2, %c0_3] : memref<8x32xf32, #tpu.memory_space<vmem>>, vector<8x32xf32>
    %c0_4 = arith.constant 0 : index
    %c0_5 = arith.constant 0 : index
    %3 = vector.load %arg3[%c0_4, %c0_5] : memref<8x32xf32, #tpu.memory_space<vmem>>, vector<8x32xf32>
    %c0_6 = arith.constant 0 : index
    %c0_7 = arith.constant 0 : index
    %4 = vector.load %arg4[%c0_6, %c0_7] : memref<8x32xf32, #tpu.memory_space<vmem>>, vector<8x32xf32>
    %c0_8 = arith.constant 0 : index
    %c0_9 = arith.constant 0 : index
    %5 = vector.load %arg5[%c0_8, %c0_9] : memref<32x96xf32, #tpu.memory_space<vmem>>, vector<32x96xf32>
    %cst = arith.constant dense<0.000000e+00> : vector<8x96xf32>
    %6 = tpu.matmul %1, %5, %cst {dimension_numbers = #tpu.dot_dimension_numbers<[1], [0], [0], [1], [0, 0, 1, 1], [], []>} : vector<8x32xf32>, vector<32x96xf32>, vector<8x96xf32> -> vector<8x96xf32>
    %c0_10 = arith.constant 0 : index
    %c0_11 = arith.constant 0 : index
    %7 = vector.load %arg6[%c0_10, %c0_11] : memref<1x96xf32, #tpu.memory_space<vmem>>, vector<1x96xf32>
    %8 = vector.broadcast %7 : vector<1x96xf32> to vector<8x96xf32>
    %9 = arith.addf %6, %8 : vector<8x96xf32>
    %10 = vector.extract_strided_slice %9 {offsets = [0, 0], sizes = [8, 32], strides = [1, 1]} : vector<8x96xf32> to vector<8x32xf32>
    %11 = arith.mulf %10, %2 : vector<8x32xf32>
    %12 = vector.extract_strided_slice %10 {offsets = [0, 1], sizes = [8, 31], strides = [1, 1]} : vector<8x32xf32> to vector<8x31xf32>
    %13 = vector.extract_strided_slice %10 {offsets = [0, 0], sizes = [8, 1], strides = [1, 1]} : vector<8x32xf32> to vector<8x1xf32>
    %14 = tpu.concatenate %12, %13 in 1 : vector<8x31xf32>, vector<8x1xf32> -> vector<8x32xf32>
    %15 = arith.mulf %14, %3 : vector<8x32xf32>
    %16 = arith.addf %11, %15 : vector<8x32xf32>
    %17 = vector.extract_strided_slice %10 {offsets = [0, 31], sizes = [8, 1], strides = [1, 1]} : vector<8x32xf32> to vector<8x1xf32>
    %18 = vector.extract_strided_slice %10 {offsets = [0, 0], sizes = [8, 31], strides = [1, 1]} : vector<8x32xf32> to vector<8x31xf32>
    %19 = tpu.concatenate %17, %18 in 1 : vector<8x1xf32>, vector<8x31xf32> -> vector<8x32xf32>
    %20 = arith.mulf %19, %4 : vector<8x32xf32>
    %21 = arith.addf %16, %20 : vector<8x32xf32>
    %22 = vector.extract_strided_slice %9 {offsets = [0, 32], sizes = [8, 32], strides = [1, 1]} : vector<8x96xf32> to vector<8x32xf32>
    %23 = arith.mulf %22, %2 : vector<8x32xf32>
    %24 = vector.extract_strided_slice %22 {offsets = [0, 1], sizes = [8, 31], strides = [1, 1]} : vector<8x32xf32> to vector<8x31xf32>
    %25 = vector.extract_strided_slice %22 {offsets = [0, 0], sizes = [8, 1], strides = [1, 1]} : vector<8x32xf32> to vector<8x1xf32>
    %26 = tpu.concatenate %24, %25 in 1 : vector<8x31xf32>, vector<8x1xf32> -> vector<8x32xf32>
    %27 = arith.mulf %26, %3 : vector<8x32xf32>
    %28 = arith.addf %23, %27 : vector<8x32xf32>
    %29 = vector.extract_strided_slice %22 {offsets = [0, 31], sizes = [8, 1], strides = [1, 1]} : vector<8x32xf32> to vector<8x1xf32>
    %30 = vector.extract_strided_slice %22 {offsets = [0, 0], sizes = [8, 31], strides = [1, 1]} : vector<8x32xf32> to vector<8x31xf32>
    %31 = tpu.concatenate %29, %30 in 1 : vector<8x1xf32>, vector<8x31xf32> -> vector<8x32xf32>
    %32 = arith.mulf %31, %4 : vector<8x32xf32>
    %33 = arith.addf %28, %32 : vector<8x32xf32>
    %34 = vector.extract_strided_slice %9 {offsets = [0, 64], sizes = [8, 32], strides = [1, 1]} : vector<8x96xf32> to vector<8x32xf32>
    %35 = vector.extract_strided_slice %21 {offsets = [0, 0], sizes = [8, 8], strides = [1, 1]} : vector<8x32xf32> to vector<8x8xf32>
    %36 = vector.extract_strided_slice %21 {offsets = [0, 8], sizes = [8, 8], strides = [1, 1]} : vector<8x32xf32> to vector<8x8xf32>
    %37 = vector.extract_strided_slice %21 {offsets = [0, 16], sizes = [8, 8], strides = [1, 1]} : vector<8x32xf32> to vector<8x8xf32>
    %38 = vector.extract_strided_slice %21 {offsets = [0, 24], sizes = [8, 8], strides = [1, 1]} : vector<8x32xf32> to vector<8x8xf32>
    %39 = vector.shape_cast %35 : vector<8x8xf32> to vector<1x8x8xf32>
    %40 = vector.shape_cast %36 : vector<8x8xf32> to vector<1x8x8xf32>
    %41 = vector.shape_cast %37 : vector<8x8xf32> to vector<1x8x8xf32>
    %42 = vector.shape_cast %38 : vector<8x8xf32> to vector<1x8x8xf32>
    %43 = tpu.concatenate %39, %40, %41, %42 in 0 : vector<1x8x8xf32>, vector<1x8x8xf32>, vector<1x8x8xf32>, vector<1x8x8xf32> -> vector<4x8x8xf32>
    %44 = vector.extract_strided_slice %33 {offsets = [0, 0], sizes = [8, 8], strides = [1, 1]} : vector<8x32xf32> to vector<8x8xf32>
    %45 = vector.extract_strided_slice %33 {offsets = [0, 8], sizes = [8, 8], strides = [1, 1]} : vector<8x32xf32> to vector<8x8xf32>
    %46 = vector.extract_strided_slice %33 {offsets = [0, 16], sizes = [8, 8], strides = [1, 1]} : vector<8x32xf32> to vector<8x8xf32>
    %47 = vector.extract_strided_slice %33 {offsets = [0, 24], sizes = [8, 8], strides = [1, 1]} : vector<8x32xf32> to vector<8x8xf32>
    %48 = vector.shape_cast %44 : vector<8x8xf32> to vector<1x8x8xf32>
    %49 = vector.shape_cast %45 : vector<8x8xf32> to vector<1x8x8xf32>
    %50 = vector.shape_cast %46 : vector<8x8xf32> to vector<1x8x8xf32>
    %51 = vector.shape_cast %47 : vector<8x8xf32> to vector<1x8x8xf32>
    %52 = tpu.concatenate %48, %49, %50, %51 in 0 : vector<1x8x8xf32>, vector<1x8x8xf32>, vector<1x8x8xf32>, vector<1x8x8xf32> -> vector<4x8x8xf32>
    %53 = vector.extract_strided_slice %34 {offsets = [0, 0], sizes = [8, 8], strides = [1, 1]} : vector<8x32xf32> to vector<8x8xf32>
    %54 = vector.extract_strided_slice %34 {offsets = [0, 8], sizes = [8, 8], strides = [1, 1]} : vector<8x32xf32> to vector<8x8xf32>
    %55 = vector.extract_strided_slice %34 {offsets = [0, 16], sizes = [8, 8], strides = [1, 1]} : vector<8x32xf32> to vector<8x8xf32>
    %56 = vector.extract_strided_slice %34 {offsets = [0, 24], sizes = [8, 8], strides = [1, 1]} : vector<8x32xf32> to vector<8x8xf32>
    %57 = vector.shape_cast %53 : vector<8x8xf32> to vector<1x8x8xf32>
    %58 = vector.shape_cast %54 : vector<8x8xf32> to vector<1x8x8xf32>
    %59 = vector.shape_cast %55 : vector<8x8xf32> to vector<1x8x8xf32>
    %60 = vector.shape_cast %56 : vector<8x8xf32> to vector<1x8x8xf32>
    %61 = tpu.concatenate %57, %58, %59, %60 in 0 : vector<1x8x8xf32>, vector<1x8x8xf32>, vector<1x8x8xf32>, vector<1x8x8xf32> -> vector<4x8x8xf32>
    %cst_12 = arith.constant dense<0.000000e+00> : vector<4x8x8xf32>
    %62 = tpu.matmul %43, %52, %cst_12 {dimension_numbers = #tpu.dot_dimension_numbers<[2], [2], [1], [1], [0, 0, 0, 1, 1, 1], [0], [0]>} : vector<4x8x8xf32>, vector<4x8x8xf32>, vector<4x8x8xf32> -> vector<4x8x8xf32>
    %cst_13 = arith.constant dense<0xFF800000> : vector<4x8xf32>
    %63 = vector.multi_reduction <maximumf>, %62, %cst_13 [2] : vector<4x8x8xf32> to vector<4x8xf32>
    %64 = vector.shape_cast %63 : vector<4x8xf32> to vector<4x8x1xf32>
    %65 = vector.broadcast %64 : vector<4x8x1xf32> to vector<4x8x8xf32>
    %66 = arith.subf %62, %65 : vector<4x8x8xf32>
    %67 = math.exp %66 : vector<4x8x8xf32>
    %cst_14 = arith.constant dense<0.000000e+00> : vector<4x8xf32>
    %68 = vector.multi_reduction <add>, %67, %cst_14 [2] : vector<4x8x8xf32> to vector<4x8xf32>
    %69 = vector.shape_cast %68 : vector<4x8xf32> to vector<4x8x1xf32>
    %70 = tpu.reciprocal %69 {approx = true} : vector<4x8x1xf32> -> vector<4x8x1xf32>
    %71 = vector.broadcast %70 : vector<4x8x1xf32> to vector<4x8x8xf32>
    %72 = arith.mulf %67, %71 : vector<4x8x8xf32>
    %cst_15 = arith.constant dense<0.000000e+00> : vector<4x8x8xf32>
    %73 = tpu.matmul %72, %61, %cst_15 {dimension_numbers = #tpu.dot_dimension_numbers<[2], [1], [1], [2], [0, 0, 0, 1, 1, 2], [0], [0]>} : vector<4x8x8xf32>, vector<4x8x8xf32>, vector<4x8x8xf32> -> vector<4x8x8xf32>
    %c0_16 = arith.constant 0 : index
    %c0_17 = arith.constant 0 : index
    %c0_18 = arith.constant 0 : index
    %74 = vector.load %arg7[%c0_16, %c0_17, %c0_18] : memref<4x8x32xf32, #tpu.memory_space<vmem>>, vector<4x8x32xf32>
    %cst_19 = arith.constant dense<0.000000e+00> : vector<4x8x32xf32>
    %75 = tpu.matmul %73, %74, %cst_19 {dimension_numbers = #tpu.dot_dimension_numbers<[2], [1], [1], [2], [0, 0, 0, 1, 1, 2], [0], [0]>} : vector<4x8x8xf32>, vector<4x8x32xf32>, vector<4x8x32xf32> -> vector<4x8x32xf32>
    %cst_20 = arith.constant dense<0.000000e+00> : vector<8x32xf32>
    %76 = vector.multi_reduction <add>, %75, %cst_20 [0] : vector<4x8x32xf32> to vector<8x32xf32>
    %c0_21 = arith.constant 0 : index
    %c0_22 = arith.constant 0 : index
    %77 = vector.load %arg8[%c0_21, %c0_22] : memref<1x32xf32, #tpu.memory_space<vmem>>, vector<1x32xf32>
    %78 = vector.broadcast %77 : vector<1x32xf32> to vector<8x32xf32>
    %79 = arith.addf %76, %78 : vector<8x32xf32>
    %80 = arith.addf %1, %79 : vector<8x32xf32>
    %c0_23 = arith.constant 0 : index
    %c0_24 = arith.constant 0 : index
    %81 = vector.load %arg13[%c0_23, %c0_24] : memref<1x32xf32, #tpu.memory_space<vmem>>, vector<1x32xf32>
    %c0_25 = arith.constant 0 : index
    %c0_26 = arith.constant 0 : index
    %82 = vector.load %arg14[%c0_25, %c0_26] : memref<1x32xf32, #tpu.memory_space<vmem>>, vector<1x32xf32>
    %cst_27 = arith.constant dense<0.000000e+00> : vector<8xf32>
    %83 = vector.multi_reduction <add>, %80, %cst_27 [1] : vector<8x32xf32> to vector<8xf32>
    %84 = vector.shape_cast %83 : vector<8xf32> to vector<8x1xf32>
    %cst_28 = arith.constant 3.200000e+01 : f32
    %85 = vector.broadcast %cst_28 : f32 to vector<8x1xf32>
    %86 = arith.divf %84, %85 : vector<8x1xf32>
    %87 = vector.broadcast %86 : vector<8x1xf32> to vector<8x32xf32>
    %88 = arith.subf %80, %87 : vector<8x32xf32>
    %89 = arith.mulf %88, %88 : vector<8x32xf32>
    %cst_29 = arith.constant dense<0.000000e+00> : vector<8xf32>
    %90 = vector.multi_reduction <add>, %89, %cst_29 [1] : vector<8x32xf32> to vector<8xf32>
    %91 = vector.shape_cast %90 : vector<8xf32> to vector<8x1xf32>
    %cst_30 = arith.constant 3.200000e+01 : f32
    %92 = vector.broadcast %cst_30 : f32 to vector<8x1xf32>
    %93 = arith.divf %91, %92 : vector<8x1xf32>
    %94 = vector.broadcast %86 : vector<8x1xf32> to vector<8x32xf32>
    %95 = arith.subf %80, %94 : vector<8x32xf32>
    %cst_31 = arith.constant 9.99999974E-6 : f32
    %96 = vector.broadcast %cst_31 : f32 to vector<8x1xf32>
    %97 = arith.addf %93, %96 : vector<8x1xf32>
    %98 = math.rsqrt %97 : vector<8x1xf32>
    %99 = vector.broadcast %98 : vector<8x1xf32> to vector<8x32xf32>
    %100 = arith.mulf %95, %99 : vector<8x32xf32>
    %101 = vector.broadcast %81 : vector<1x32xf32> to vector<8x32xf32>
    %102 = arith.mulf %100, %101 : vector<8x32xf32>
    %103 = vector.broadcast %82 : vector<1x32xf32> to vector<8x32xf32>
    %104 = arith.addf %102, %103 : vector<8x32xf32>
    %c0_32 = arith.constant 0 : index
    %c0_33 = arith.constant 0 : index
    %105 = vector.load %arg9[%c0_32, %c0_33] : memref<32x64xf32, #tpu.memory_space<vmem>>, vector<32x64xf32>
    %cst_34 = arith.constant dense<0.000000e+00> : vector<8x64xf32>
    %106 = tpu.matmul %104, %105, %cst_34 {dimension_numbers = #tpu.dot_dimension_numbers<[1], [0], [0], [1], [0, 0, 1, 1], [], []>} : vector<8x32xf32>, vector<32x64xf32>, vector<8x64xf32> -> vector<8x64xf32>
    %c0_35 = arith.constant 0 : index
    %c0_36 = arith.constant 0 : index
    %107 = vector.load %arg10[%c0_35, %c0_36] : memref<1x64xf32, #tpu.memory_space<vmem>>, vector<1x64xf32>
    %108 = vector.broadcast %107 : vector<1x64xf32> to vector<8x64xf32>
    %109 = arith.addf %106, %108 : vector<8x64xf32>
    %cst_37 = arith.constant 0.000000e+00 : f32
    %110 = vector.broadcast %cst_37 : f32 to vector<8x64xf32>
    %111 = arith.maximumf %109, %110 : vector<8x64xf32>
    %c0_38 = arith.constant 0 : index
    %c0_39 = arith.constant 0 : index
    %112 = vector.load %arg11[%c0_38, %c0_39] : memref<64x32xf32, #tpu.memory_space<vmem>>, vector<64x32xf32>
    %cst_40 = arith.constant dense<0.000000e+00> : vector<8x32xf32>
    %113 = tpu.matmul %111, %112, %cst_40 {dimension_numbers = #tpu.dot_dimension_numbers<[1], [0], [0], [1], [0, 0, 1, 1], [], []>} : vector<8x64xf32>, vector<64x32xf32>, vector<8x32xf32> -> vector<8x32xf32>
    %c0_41 = arith.constant 0 : index
    %c0_42 = arith.constant 0 : index
    %114 = vector.load %arg12[%c0_41, %c0_42] : memref<1x32xf32, #tpu.memory_space<vmem>>, vector<1x32xf32>
    %115 = vector.broadcast %114 : vector<1x32xf32> to vector<8x32xf32>
    %116 = arith.addf %113, %115 : vector<8x32xf32>
    %117 = arith.addf %104, %116 : vector<8x32xf32>
    %c0_43 = arith.constant 0 : index
    %c0_44 = arith.constant 0 : index
    %118 = vector.load %arg15[%c0_43, %c0_44] : memref<1x32xf32, #tpu.memory_space<vmem>>, vector<1x32xf32>
    %c0_45 = arith.constant 0 : index
    %c0_46 = arith.constant 0 : index
    %119 = vector.load %arg16[%c0_45, %c0_46] : memref<1x32xf32, #tpu.memory_space<vmem>>, vector<1x32xf32>
    %cst_47 = arith.constant dense<0.000000e+00> : vector<8xf32>
    %120 = vector.multi_reduction <add>, %117, %cst_47 [1] : vector<8x32xf32> to vector<8xf32>
    %121 = vector.shape_cast %120 : vector<8xf32> to vector<8x1xf32>
    %cst_48 = arith.constant 3.200000e+01 : f32
    %122 = vector.broadcast %cst_48 : f32 to vector<8x1xf32>
    %123 = arith.divf %121, %122 : vector<8x1xf32>
    %124 = vector.broadcast %123 : vector<8x1xf32> to vector<8x32xf32>
    %125 = arith.subf %117, %124 : vector<8x32xf32>
    %126 = arith.mulf %125, %125 : vector<8x32xf32>
    %cst_49 = arith.constant dense<0.000000e+00> : vector<8xf32>
    %127 = vector.multi_reduction <add>, %126, %cst_49 [1] : vector<8x32xf32> to vector<8xf32>
    %128 = vector.shape_cast %127 : vector<8xf32> to vector<8x1xf32>
    %cst_50 = arith.constant 3.200000e+01 : f32
    %129 = vector.broadcast %cst_50 : f32 to vector<8x1xf32>
    %130 = arith.divf %128, %129 : vector<8x1xf32>
    %131 = vector.broadcast %123 : vector<8x1xf32> to vector<8x32xf32>
    %132 = arith.subf %117, %131 : vector<8x32xf32>
    %cst_51 = arith.constant 9.99999974E-6 : f32
    %133 = vector.broadcast %cst_51 : f32 to vector<8x1xf32>
    %134 = arith.addf %130, %133 : vector<8x1xf32>
    %135 = math.rsqrt %134 : vector<8x1xf32>
    %136 = vector.broadcast %135 : vector<8x1xf32> to vector<8x32xf32>
    %137 = arith.mulf %132, %136 : vector<8x32xf32>
    %138 = vector.broadcast %118 : vector<1x32xf32> to vector<8x32xf32>
    %139 = arith.mulf %137, %138 : vector<8x32xf32>
    %140 = vector.broadcast %119 : vector<1x32xf32> to vector<8x32xf32>
    %141 = arith.addf %139, %140 : vector<8x32xf32>
    %c0_52 = arith.constant 0 : index
    %c0_53 = arith.constant 0 : index
    %c0_54 = arith.constant 0 : index
    %142 = vector.load %arg17[%c0_52, %c0_53, %c0_54] : memref<1x8x32xf32, #tpu.memory_space<vmem>>, vector<1x8x32xf32>
    %143 = vector.shape_cast %142 : vector<1x8x32xf32> to vector<8x32xf32>
    %144 = vector.shape_cast %141 : vector<8x32xf32> to vector<1x8x32xf32>
    tpu.vector_store %arg17[%c0_52, %c0_53, %c0_54], %144 {strides = array<i32>} : memref<1x8x32xf32, #tpu.memory_space<vmem>>, vector<1x8x32xf32>,
    return
  }
  func.func @transform_0(%arg0: i32) -> (i32, i32, i32) {
    %c0_i32 = arith.constant 0 : i32
    %c0_i32_0 = arith.constant 0 : i32
    %c0_i32_1 = arith.constant 0 : i32
    return %arg0, %c0_i32, %c0_i32_0 : i32, i32, i32
  }
  func.func @transform_1(%arg0: i32) -> (i32, i32) {
    %c0_i32 = arith.constant 0 : i32
    %c0_i32_0 = arith.constant 0 : i32
    %c0_i32_1 = arith.constant 0 : i32
    return %c0_i32, %c0_i32_0 : i32, i32
  }
  func.func @transform_2(%arg0: i32) -> (i32, i32) {
    %c0_i32 = arith.constant 0 : i32
    %c0_i32_0 = arith.constant 0 : i32
    %c0_i32_1 = arith.constant 0 : i32
    return %c0_i32, %c0_i32_0 : i32, i32
  }
  func.func @transform_3(%arg0: i32) -> (i32, i32) {
    %c0_i32 = arith.constant 0 : i32
    %c0_i32_0 = arith.constant 0 : i32
    %c0_i32_1 = arith.constant 0 : i32
    return %c0_i32, %c0_i32_0 : i32, i32
  }
  func.func @transform_4(%arg0: i32) -> (i32, i32) {
    %c0_i32 = arith.constant 0 : i32
    %c0_i32_0 = arith.constant 0 : i32
    %c0_i32_1 = arith.constant 0 : i32
    return %c0_i32, %c0_i32_0 : i32, i32
  }
  func.func @transform_5(%arg0: i32) -> (i32, i32) {
    %c0_i32 = arith.constant 0 : i32
    %c0_i32_0 = arith.constant 0 : i32
    %c0_i32_1 = arith.constant 0 : i32
    return %c0_i32, %c0_i32_0 : i32, i32
  }
  func.func @transform_6(%arg0: i32) -> (i32, i32, i32) {
    %c0_i32 = arith.constant 0 : i32
    %c0_i32_0 = arith.constant 0 : i32
    %c0_i32_1 = arith.constant 0 : i32
    %c0_i32_2 = arith.constant 0 : i32
    return %c0_i32, %c0_i32_0, %c0_i32_1 : i32, i32, i32
  }
  func.func @transform_7(%arg0: i32) -> (i32, i32) {
    %c0_i32 = arith.constant 0 : i32
    %c0_i32_0 = arith.constant 0 : i32
    %c0_i32_1 = arith.constant 0 : i32
    return %c0_i32, %c0_i32_0 : i32, i32
  }
  func.func @transform_8(%arg0: i32) -> (i32, i32) {
    %c0_i32 = arith.constant 0 : i32
    %c0_i32_0 = arith.constant 0 : i32
    %c0_i32_1 = arith.constant 0 : i32
    return %c0_i32, %c0_i32_0 : i32, i32
  }
  func.func @transform_9(%arg0: i32) -> (i32, i32) {
    %c0_i32 = arith.constant 0 : i32
    %c0_i32_0 = arith.constant 0 : i32
    %c0_i32_1 = arith.constant 0 : i32
    return %c0_i32, %c0_i32_0 : i32, i32
  }
  func.func @transform_10(%arg0: i32) -> (i32, i32) {
    %c0_i32 = arith.constant 0 : i32
    %c0_i32_0 = arith.constant 0 : i32
    %c0_i32_1 = arith.constant 0 : i32
    return %c0_i32, %c0_i32_0 : i32, i32
  }
  func.func @transform_11(%arg0: i32) -> (i32, i32) {
    %c0_i32 = arith.constant 0 : i32
    %c0_i32_0 = arith.constant 0 : i32
    %c0_i32_1 = arith.constant 0 : i32
    return %c0_i32, %c0_i32_0 : i32, i32
  }
  func.func @transform_12(%arg0: i32) -> (i32, i32) {
    %c0_i32 = arith.constant 0 : i32
    %c0_i32_0 = arith.constant 0 : i32
    %c0_i32_1 = arith.constant 0 : i32
    return %c0_i32, %c0_i32_0 : i32, i32
  }
  func.func @transform_13(%arg0: i32) -> (i32, i32) {
    %c0_i32 = arith.constant 0 : i32
    %c0_i32_0 = arith.constant 0 : i32
    %c0_i32_1 = arith.constant 0 : i32
    return %c0_i32, %c0_i32_0 : i32, i32
  }
  func.func @transform_14(%arg0: i32) -> (i32, i32) {
    %c0_i32 = arith.constant 0 : i32
    %c0_i32_0 = arith.constant 0 : i32
    %c0_i32_1 = arith.constant 0 : i32
    return %c0_i32, %c0_i32_0 : i32, i32
  }
  func.func @transform_15(%arg0: i32) -> (i32, i32) {
    %c0_i32 = arith.constant 0 : i32
    %c0_i32_0 = arith.constant 0 : i32
    %c0_i32_1 = arith.constant 0 : i32
    return %c0_i32, %c0_i32_0 : i32, i32
  }
  func.func @transform_16(%arg0: i32) -> (i32, i32, i32) {
    %c0_i32 = arith.constant 0 : i32
    %c0_i32_0 = arith.constant 0 : i32
    %c0_i32_1 = arith.constant 0 : i32
    return %arg0, %c0_i32, %c0_i32_0 : i32, i32, i32
  }
}

</mosaic_0001>

<llo_original>
// kernel: tile.19
$region0: #{tile.19}
  %s0 = inlined_call_operand.vmem [shape: f32[8,4,8], index: 0, kind: input, shape index: {}]
  %s1 = inlined_call_operand.vmem [shape: f32[8,32], index: 1, kind: output, shape index: {}]
  $region1: #{tile.19} parent=0
    #allocation0 [shape = 'u8[32768]{0}', space=vmem, size = 0x8000, scoped, tag = 'scoped mem for input reshape']
    %s3 = sshll.u32 1, 4
    %s4 = ssub.s32 %s3, 1
    %s5 = smul.addr 4, 7
    %s6 = scalar_lea.vmem %s0, %s5
    %v7 = vld [vmem:[%s6] sm:%s4]
    %s8 = scalar_lea.vmem [#allocation0], 56
    %9 = vst [vmem:[%s8] sm:%s4] %v7
    %s10 = smul.addr 4, 6
    %s11 = scalar_lea.vmem %s0, %s10
    %v12 = vld [vmem:[%s11] sm:%s4]
    %s13 = scalar_lea.vmem [#allocation0], 48
    %14 = vst [vmem:[%s13] sm:%s4] %v12
    %s15 = smul.addr 4, 5
    %s16 = scalar_lea.vmem %s0, %s15
    %v17 = vld [vmem:[%s16] sm:%s4]
    %s18 = scalar_lea.vmem [#allocation0], 40
    %19 = vst [vmem:[%s18] sm:%s4] %v17
    %s20 = smul.addr 4, 4
    %s21 = scalar_lea.vmem %s0, %s20
    %v22 = vld [vmem:[%s21] sm:%s4]
    %s23 = scalar_lea.vmem [#allocation0], 32
    %24 = vst [vmem:[%s23] sm:%s4] %v22
    %s25 = smul.addr 4, 3
    %s26 = scalar_lea.vmem %s0, %s25
    %v27 = vld [vmem:[%s26] sm:%s4]
    %s28 = scalar_lea.vmem [#allocation0], 24
    %29 = vst [vmem:[%s28] sm:%s4] %v27
    %s30 = smul.addr 4, 2
    %s31 = scalar_lea.vmem %s0, %s30
    %v32 = vld [vmem:[%s31] sm:%s4]
    %s33 = scalar_lea.vmem [#allocation0], 16
    %34 = vst [vmem:[%s33] sm:%s4] %v32
    %s35 = scalar_lea.vmem %s0, 4
    %v36 = vld [vmem:[%s35] sm:%s4]
    %s37 = scalar_lea.vmem [#allocation0], 8
    %38 = vst [vmem:[%s37] sm:%s4] %v36
    %v39 = vld [vmem:[%s0] sm:%s4]
    %40 = vst [vmem:[#allocation0] sm:%s4] %v39
    %v41 = vld [vmem:[#allocation0] ss:$8 sm:$0xf]
    %v42 = vld [vmem:[#allocation0] ss:$8 sm:$0xf0]
    %vm43 = vcmask 1047556
    %v44 = vsel %vm43, %v42, %v41
    %vm45 = vcmask 64512
    %46 = vst.msk [vmem:[%s1] sm:$0xff] %vm45, %v44
    %s47 = scalar_lea.vmem [#allocation0], 3
    %v48 = vld [vmem:[%s47] ss:$8 sm:$0xf]
    %s49 = scalar_lea.vmem [#allocation0], 3
    %v50 = vld [vmem:[%s49] ss:$8 sm:$0xf0]
    %vm51 = vcmask 1047556
    %v52 = vsel %vm51, %v50, %v48
    %53 = vrot.lane.b32.xlu0 %v52, 24
    %v54 = vpop.permute.xlu0 %53
    %vm55 = vcmask 261312
    %56 = vst.msk [vmem:[%s1] sm:$0xff] %vm55, %v54
    %s57 = scalar_lea.vmem [#allocation0], 2
    %v58 = vld [vmem:[%s57] ss:$8 sm:$0xf]
    %s59 = scalar_lea.vmem [#allocation0], 2
    %v60 = vld [vmem:[%s59] ss:$8 sm:$0xf0]
    %vm61 = vcmask 1047556
    %v62 = vsel %vm61, %v60, %v58
    %63 = vrot.lane.b32.xlu0 %v62, 16
    %v64 = vpop.permute.xlu0 %63
    %vm65 = vcmask 195712
    %66 = vst.msk [vmem:[%s1] sm:$0xff] %vm65, %v64
    %s67 = scalar_lea.vmem [#allocation0], 1
    %v68 = vld [vmem:[%s67] ss:$8 sm:$0xf]
    %s69 = scalar_lea.vmem [#allocation0], 1
    %v70 = vld [vmem:[%s69] ss:$8 sm:$0xf0]
    %vm71 = vcmask 1047556
    %v72 = vsel %vm71, %v70, %v68
    %73 = vrot.lane.b32.xlu0 %v72, 8
    %v74 = vpop.permute.xlu0 %73
    %vm75 = vcmask 130112
    %76 = vst.msk [vmem:[%s1] sm:$0xff] %vm75, %v74

// kernel: transformer_forward_pallas.7
$region0: #{transformer_forward_pallas.7}
  #allocation0 [shape = 'u32[]', space=smem, size = 0x4, offset = 0x4, fixed_abs, tag = 'smem constant byte address 0x4 - core index']
  #allocation1 [shape = 'u32[144,128]{1,0:T(1,128)}', space=vmem, size = 0x12000, scoped, tag = 'internal scratch']
  #allocation2 [shape = 'f32[16,8]{1,0:T(8,128)}', space=vmem, size = 0x2000, scoped, tag = 'scratch operand']
  %s0 = inlined_call_operand.vmem [shape: f32[16,32], index: 0, kind: input, shape index: {}]
  %s1 = inlined_call_operand.vmem [shape: f32[32,8], index: 1, kind: input, shape index: {}]
  %s2 = inlined_call_operand.vmem [shape: f32[1,8], index: 2, kind: input, shape index: {}]
  %s3 = inlined_call_operand.hbm [shape: f32[16,8], index: 3, kind: output, shape index: {}]
  %s4 = sld [smem:[#allocation0]]
  $region30: #{transformer_forward_pallas.7} parent=0
    _
  %s6 = ssub.s32 1, %s4
  %s7 = scalar_select 0, %s6, %s4
  $region1: #{transformer_forward_pallas.7} parent=0
    #allocation3 [shape = 'u8[8192]{0}', space=vmem, size = 0x2000, scoped, tag = 'output window, operand 0, single buffered']
    #allocation4 [shape = 's32[1]{0}', space=sflag, size = 0x4, scoped, tag = 'scoped memory for transformer_forward_pallas.7']
    %8 = vsyncpa [#allocation4], 0
    // Predicated region
    $region2: #{transformer_forward_pallas.7} parent=1 // pred_check
      _
    $region3: #{transformer_forward_pallas.7} parent=1 // pred_check_branch
      %10 = sbr.rel (0) target = $region5
    $region4: #{transformer_forward_pallas.7} parent=1 // pred_region
      _
    $region5: #{transformer_forward_pallas.7} parent=1 // pred_fallthru
      _
    // Predicated region
    $region6: #{transformer_forward_pallas.7} parent=1 // pred_check
      _
    $region7: #{transformer_forward_pallas.7} parent=1 // pred_check_branch
      %12 = sbr.rel (0) target = $region9
    $region8: #{transformer_forward_pallas.7} parent=1 // pred_region
      _
    $region9: #{transformer_forward_pallas.7} parent=1 // pred_fallthru
      _
    // Predicated region
    $region10: #{transformer_forward_pallas.7} parent=1 // pred_check
      _
    $region11: #{transformer_forward_pallas.7} parent=1 // pred_check_branch
      %14 = sbr.rel (0) target = $region13
    $region12: #{transformer_forward_pallas.7} parent=1 // pred_region
      _
    $region13: #{transformer_forward_pallas.7} parent=1 // pred_fallthru
      _
    %p15 = scmp.eq.s32.totalorder 0, 0
    // Predicated region
    $region14: #{transformer_forward_pallas.7} parent=1 // pred_check
      %p16 = pneg %p15
    $region15: #{transformer_forward_pallas.7} parent=1 // pred_check_branch
      %18 = sbr.rel (%p16) target = $region17
    $region16: #{transformer_forward_pallas.7} parent=1 // pred_region
      %vm19 = vcmask 64512
      %20 = vst.msk [vmem:[#allocation2] sm:$0xff] %vm19, 0.0
      %21 = vst.msk [vmem:[#allocation2 + $0x8] sm:$0xff] %vm19, 0.0
    $region17: #{transformer_forward_pallas.7} parent=1 // pred_fallthru
      _
    %v22 = vld [vmem:[#allocation2] sm:$0xff]
    %v23 = vld [vmem:[#allocation2 + $0x8] sm:$0xff]
    %v24 = vld [vmem:[%s0] sm:$0xff]
    %v25 = vld [vmem:[%s0 + $0x8] sm:$0xff]
    %v26 = vld [vmem:[%s1] sm:$0xff]
    %v27 = vld [vmem:[%s1 + $0x8] sm:$0xff]
    %v28 = vld [vmem:[%s1 + $0x10] sm:$0xff]
    %v29 = vld [vmem:[%s1 + $0x18] sm:$0xff]
    %vm30 = vcmask 261120
    %v32 = vsel %vm30, %v24, 0
    %v35 = vsel %vm30, %v25, 0
    %37 = vmatprep.subr.mxu0 0.0
    %38 = vmatpush1.msra.mxu0 0.0
    %39 = vmatprep.subr.mxu0 0.0
    %40 = vmatpush1.msra.mxu0 0.0
    %41 = vmatprep.subr.mxu0 0.0
    %42 = vmatpush1.msra.mxu0 0.0
    %43 = vmatprep.subr.mxu0 0.0
    %44 = vmatpush1.msra.mxu0 0.0
    %45 = vmatprep.subr.mxu0 0.0
    %46 = vmatpush1.msra.mxu0 0.0
    %47 = vmatprep.subr.mxu0 0.0
    %48 = vmatpush1.msra.mxu0 0.0
    %49 = vmatprep.subr.mxu0 0.0
    %50 = vmatpush1.msra.mxu0 0.0
    %51 = vmatprep.subr.mxu0 0.0
    %52 = vmatpush1.msra.mxu0 0.0
    %53 = vmatprep.subr.mxu0 0.0
    %54 = vmatpush1.msra.mxu0 0.0
    %55 = vmatprep.subr.mxu0 0.0
    %56 = vmatpush1.msra.mxu0 0.0
    %57 = vmatprep.subr.mxu0 0.0
    %58 = vmatpush1.msra.mxu0 0.0
    %59 = vmatprep.subr.mxu0 0.0
    %60 = vmatpush1.msra.mxu0 0.0
    %61 = vmatprep.subr.mxu0 0.0
    %62 = vmatpush1.msra.mxu0 %v29
    %63 = vmatprep.subr.mxu0 0.0
    %64 = vmatpush1.msra.mxu0 %v28
    %65 = vmatprep.subr.mxu0 0.0
    %66 = vmatpush1.msra.mxu0 %v27
    %67 = vmatprep.subr.mxu0 0.0
    %68 = vmatpush1.msra.mxu0 %v26
    %69 = vmatprep.subr.mxu0 0.0
    %70 = vmatpush2.msra.mxu0 0.0
    %71 = vmatprep.subr.mxu0 0.0
    %72 = vmatpush2.msra.mxu0 0.0
    %73 = vmatprep.subr.mxu0 0.0
    %74 = vmatpush2.msra.mxu0 0.0
    %75 = vmatprep.subr.mxu0 0.0
    %76 = vmatpush2.msra.mxu0 0.0
    %77 = vmatprep.subr.mxu0 0.0
    %78 = vmatpush2.msra.mxu0 0.0
    %79 = vmatprep.subr.mxu0 0.0
    %80 = vmatpush2.msra.mxu0 0.0
    %81 = vmatprep.subr.mxu0 0.0
    %82 = vmatpush2.msra.mxu0 0.0
    %83 = vmatprep.subr.mxu0 0.0
    %84 = vmatpush2.msra.mxu0 0.0
    %85 = vmatprep.subr.mxu0 0.0
    %86 = vmatpush2.msra.mxu0 0.0
    %87 = vmatprep.subr.mxu0 0.0
    %88 = vmatpush2.msra.mxu0 0.0
    %89 = vmatprep.subr.mxu0 0.0
    %90 = vmatpush2.msra.mxu0 0.0
    %91 = vmatprep.subr.mxu0 0.0
    %92 = vmatpush2.msra.mxu0 0.0
    %93 = vmatprep.subr.mxu0 0.0
    %94 = vmatpush2.msra.mxu0 0.0
    %95 = vmatprep.subr.mxu0 0.0
    %96 = vmatpush2.msra.mxu0 0.0
    %97 = vmatprep.subr.mxu0 0.0
    %98 = vmatpush2.msra.mxu0 0.0
    %99 = vmatprep.subr.mxu0 0.0
    %100 = vmatpush2.msra.mxu0 0.0
    %101 = vmatprep.mubr.f32.mxu0 0.0
    %102 = vmatmul.mubr.f32.gmra.mxu0 %v32
    %v103 = vpop.f32.mrf.mxu0
    %v104 = vadd.f32 0.0, %v103
    %v105 = vpop.f32.mrf.mxu0
    %106 = vmatprep.mubr.f32.mxu0 0.0
    %107 = vmatmul.mubr.f32.gmra.mxu0 %v35
    %v108 = vpop.f32.mrf.mxu0
    %v109 = vadd.f32 0.0, %v108
    %v110 = vpop.f32.mrf.mxu0
    %111 = vdwg.mxu0
    %v112 = vadd.f32 %v22, %v104
    %v113 = vadd.f32 %v23, %v109
    %vm114 = vcmask 64512
    %115 = vst.msk [vmem:[#allocation2] sm:$0xff] %vm114, %v112
    %116 = vst.msk [vmem:[#allocation2 + $0x8] sm:$0xff] %vm114, %v113
    // Predicated region
    $region18: #{transformer_forward_pallas.7} parent=1 // pred_check
      %p117 = pneg %p15
    $region19: #{transformer_forward_pallas.7} parent=1 // pred_check_branch
      %119 = sbr.rel (%p117) target = $region21
    $region20: #{transformer_forward_pallas.7} parent=1 // pred_region
      %v120 = vld [vmem:[#allocation2] sm:$0xff]
      %v121 = vld [vmem:[#allocation2 + $0x8] sm:$0xff]
      %v122 = vld [vmem:[%s2] sm:$0x1]
      %v124 = vlaneseq
      %v125 = vshrl.u32 %v124, 7
      %v126 = vsub.s32 0, %v125
      %v127 = vrot.slane %v122, %v126
      %v129 = vadd.f32 %v120, %v127
      %v130 = vadd.f32 %v121, %v127
      %131 = vst.msk [vmem:[#allocation3] sm:$0xff] %vm114, %v129
      %132 = vst.msk [vmem:[#allocation3 + $0x8] sm:$0xff] %vm114, %v130
    $region21: #{transformer_forward_pallas.7} parent=1 // pred_fallthru
      _
    // Predicated region
    $region22: #{transformer_forward_pallas.7} parent=1 // pred_check
      _
    $region23: #{transformer_forward_pallas.7} parent=1 // pred_check_branch
      %134 = sbr.rel (0) target = $region25
    $region24: #{transformer_forward_pallas.7} parent=1 // pred_region
      %s136 = ssub.s32 256, 256
      %137 = vsyncadd [#allocation4], %s136
      %s138 = sshll.u32 [#allocation3], 4
      %s139 = int_to_ptr.vmem [resolvable:$true] %s138
      %144 = dma.vmem_to_hbm [thread:$0]  %s139, 256, %s3, [#allocation4], 128, 128, 8
    $region25: #{transformer_forward_pallas.7} parent=1 // pred_fallthru
      _
    // Predicated region
    $region26: #{transformer_forward_pallas.7} parent=1 // pred_check
      _
    $region27: #{transformer_forward_pallas.7} parent=1 // pred_check_branch
      %146 = sbr.rel (0) target = $region29
    $region28: #{transformer_forward_pallas.7} parent=1 // pred_region
      %147 = dma.done [#allocation4], 256
    $region29: #{transformer_forward_pallas.7} parent=1 // pred_fallthru
      _
    %148 = vsyncpa [#allocation4], 1

// kernel: transformer_forward_pallas.4
$region0: #{transformer_forward_pallas.4}
  #allocation0 [shape = 'u32[]', space=smem, size = 0x4, offset = 0x4, fixed_abs, tag = 'smem constant byte address 0x4 - core index']
  #allocation1 [shape = 'u32[144,128]{1,0:T(1,128)}', space=vmem, size = 0x12000, scoped, tag = 'internal scratch']
  #allocation2 [shape = 'f32[16,32]{1,0:T(8,128)}', space=vmem, size = 0x2000, scoped, tag = 'scratch operand']
  %s0 = inlined_call_operand.vmem [shape: f32[16,8], index: 0, kind: input, shape index: {}]
  %s1 = inlined_call_operand.vmem [shape: f32[8,32], index: 1, kind: input, shape index: {}]
  %s2 = inlined_call_operand.vmem [shape: f32[1,32], index: 2, kind: input, shape index: {}]
  %s3 = inlined_call_operand.vmem [shape: f32[16,32], index: 3, kind: output, shape index: {}]
  %s4 = sld [smem:[#allocation0]]
  $region30: #{transformer_forward_pallas.4} parent=0
    _
  %s6 = ssub.s32 1, %s4
  %s7 = scalar_select 0, %s6, %s4
  // Predicated region
  $region2: #{transformer_forward_pallas.4} parent=0 // pred_check
    _
  $region3: #{transformer_forward_pallas.4} parent=0 // pred_check_branch
    %9 = sbr.rel (0) target = $region5
  $region4: #{transformer_forward_pallas.4} parent=0 // pred_region
    _
  $region5: #{transformer_forward_pallas.4} parent=0 // pred_fallthru
    _
  // Predicated region
  $region6: #{transformer_forward_pallas.4} parent=0 // pred_check
    _
  $region7: #{transformer_forward_pallas.4} parent=0 // pred_check_branch
    %11 = sbr.rel (0) target = $region9
  $region8: #{transformer_forward_pallas.4} parent=0 // pred_region
    _
  $region9: #{transformer_forward_pallas.4} parent=0 // pred_fallthru
    _
  // Predicated region
  $region10: #{transformer_forward_pallas.4} parent=0 // pred_check
    _
  $region11: #{transformer_forward_pallas.4} parent=0 // pred_check_branch
    %13 = sbr.rel (0) target = $region13
  $region12: #{transformer_forward_pallas.4} parent=0 // pred_region
    _
  $region13: #{transformer_forward_pallas.4} parent=0 // pred_fallthru
    _
  %p14 = scmp.eq.s32.totalorder 0, 0
  // Predicated region
  $region14: #{transformer_forward_pallas.4} parent=0 // pred_check
    %p15 = pneg %p14
  $region15: #{transformer_forward_pallas.4} parent=0 // pred_check_branch
    %17 = sbr.rel (%p15) target = $region17
  $region16: #{transformer_forward_pallas.4} parent=0 // pred_region
    %vm18 = vcmask 261120
    %19 = vst.msk [vmem:[#allocation2] sm:$0xff] %vm18, 0.0
    %20 = vst.msk [vmem:[#allocation2 + $0x8] sm:$0xff] %vm18, 0.0
  $region17: #{transformer_forward_pallas.4} parent=0 // pred_fallthru
    _
  %v21 = vld [vmem:[#allocation2] sm:$0xff]
  %v22 = vld [vmem:[#allocation2 + $0x8] sm:$0xff]
  %v23 = vld [vmem:[%s0] sm:$0xff]
  %v24 = vld [vmem:[%s0 + $0x8] sm:$0xff]
  %v25 = vld [vmem:[%s1] sm:$0xff]
  %vm26 = vcmask 64512
  %v28 = vsel %vm26, %v23, 0
  %v31 = vsel %vm26, %v24, 0
  %33 = vmatprep.subr.mxu0 0.0
  %34 = vmatpush1.msra.mxu0 0.0
  %35 = vmatprep.subr.mxu0 0.0
  %36 = vmatpush1.msra.mxu0 0.0
  %37 = vmatprep.subr.mxu0 0.0
  %38 = vmatpush1.msra.mxu0 0.0
  %39 = vmatprep.subr.mxu0 0.0
  %40 = vmatpush1.msra.mxu0 0.0
  %41 = vmatprep.subr.mxu0 0.0
  %42 = vmatpush1.msra.mxu0 0.0
  %43 = vmatprep.subr.mxu0 0.0
  %44 = vmatpush1.msra.mxu0 0.0
  %45 = vmatprep.subr.mxu0 0.0
  %46 = vmatpush1.msra.mxu0 0.0
  %47 = vmatprep.subr.mxu0 0.0
  %48 = vmatpush1.msra.mxu0 0.0
  %49 = vmatprep.subr.mxu0 0.0
  %50 = vmatpush1.msra.mxu0 0.0
  %51 = vmatprep.subr.mxu0 0.0
  %52 = vmatpush1.msra.mxu0 0.0
  %53 = vmatprep.subr.mxu0 0.0
  %54 = vmatpush1.msra.mxu0 0.0
  %55 = vmatprep.subr.mxu0 0.0
  %56 = vmatpush1.msra.mxu0 0.0
  %57 = vmatprep.subr.mxu0 0.0
  %58 = vmatpush1.msra.mxu0 0.0
  %59 = vmatprep.subr.mxu0 0.0
  %60 = vmatpush1.msra.mxu0 0.0
  %61 = vmatprep.subr.mxu0 0.0
  %62 = vmatpush1.msra.mxu0 0.0
  %63 = vmatprep.subr.mxu0 0.0
  %64 = vmatpush1.msra.mxu0 %v25
  %65 = vmatprep.subr.mxu0 0.0
  %66 = vmatpush2.msra.mxu0 0.0
  %67 = vmatprep.subr.mxu0 0.0
  %68 = vmatpush2.msra.mxu0 0.0
  %69 = vmatprep.subr.mxu0 0.0
  %70 = vmatpush2.msra.mxu0 0.0
  %71 = vmatprep.subr.mxu0 0.0
  %72 = vmatpush2.msra.mxu0 0.0
  %73 = vmatprep.subr.mxu0 0.0
  %74 = vmatpush2.msra.mxu0 0.0
  %75 = vmatprep.subr.mxu0 0.0
  %76 = vmatpush2.msra.mxu0 0.0
  %77 = vmatprep.subr.mxu0 0.0
  %78 = vmatpush2.msra.mxu0 0.0
  %79 = vmatprep.subr.mxu0 0.0
  %80 = vmatpush2.msra.mxu0 0.0
  %81 = vmatprep.subr.mxu0 0.0
  %82 = vmatpush2.msra.mxu0 0.0
  %83 = vmatprep.subr.mxu0 0.0
  %84 = vmatpush2.msra.mxu0 0.0
  %85 = vmatprep.subr.mxu0 0.0
  %86 = vmatpush2.msra.mxu0 0.0
  %87 = vmatprep.subr.mxu0 0.0
  %88 = vmatpush2.msra.mxu0 0.0
  %89 = vmatprep.subr.mxu0 0.0
  %90 = vmatpush2.msra.mxu0 0.0
  %91 = vmatprep.subr.mxu0 0.0
  %92 = vmatpush2.msra.mxu0 0.0
  %93 = vmatprep.subr.mxu0 0.0
  %94 = vmatpush2.msra.mxu0 0.0
  %95 = vmatprep.subr.mxu0 0.0
  %96 = vmatpush2.msra.mxu0 0.0
  %97 = vmatprep.mubr.f32.mxu0 0.0
  %98 = vmatmul.mubr.f32.gmra.mxu0 %v28
  %v99 = vpop.f32.mrf.mxu0
  %v100 = vadd.f32 0.0, %v99
  %v101 = vpop.f32.mrf.mxu0
  %102 = vmatprep.mubr.f32.mxu0 0.0
  %103 = vmatmul.mubr.f32.gmra.mxu0 %v31
  %v104 = vpop.f32.mrf.mxu0
  %v105 = vadd.f32 0.0, %v104
  %v106 = vpop.f32.mrf.mxu0
  %107 = vdwg.mxu0
  %v108 = vadd.f32 %v21, %v100
  %v109 = vadd.f32 %v22, %v105
  %vm110 = vcmask 261120
  %111 = vst.msk [vmem:[#allocation2] sm:$0xff] %vm110, %v108
  %112 = vst.msk [vmem:[#allocation2 + $0x8] sm:$0xff] %vm110, %v109
  // Predicated region
  $region18: #{transformer_forward_pallas.4} parent=0 // pred_check
    %p113 = pneg %p14
  $region19: #{transformer_forward_pallas.4} parent=0 // pred_check_branch
    %115 = sbr.rel (%p113) target = $region21
  $region20: #{transformer_forward_pallas.4} parent=0 // pred_region
    %v116 = vld [vmem:[#allocation2] sm:$0xff]
    %v117 = vld [vmem:[#allocation2 + $0x8] sm:$0xff]
    %v118 = vld [vmem:[%s2] sm:$0x1]
    %v120 = vlaneseq
    %v121 = vshrl.u32 %v120, 7
    %v122 = vsub.s32 0, %v121
    %v123 = vrot.slane %v118, %v122
    %v125 = vadd.f32 %v116, %v123
    %v126 = vadd.f32 %v117, %v123
    %127 = vst.msk [vmem:[%s3] sm:$0xff] %vm110, %v125
    %128 = vst.msk [vmem:[%s3 + $0x8] sm:$0xff] %vm110, %v126
  $region21: #{transformer_forward_pallas.4} parent=0 // pred_fallthru
    _
  // Predicated region
  $region22: #{transformer_forward_pallas.4} parent=0 // pred_check
    _
  $region23: #{transformer_forward_pallas.4} parent=0 // pred_check_branch
    %130 = sbr.rel (0) target = $region25
  $region24: #{transformer_forward_pallas.4} parent=0 // pred_region
    _
  $region25: #{transformer_forward_pallas.4} parent=0 // pred_fallthru
    _
  // Predicated region
  $region26: #{transformer_forward_pallas.4} parent=0 // pred_check
    _
  $region27: #{transformer_forward_pallas.4} parent=0 // pred_check_branch
    %132 = sbr.rel (0) target = $region29
  $region28: #{transformer_forward_pallas.4} parent=0 // pred_region
    _
  $region29: #{transformer_forward_pallas.4} parent=0 // pred_fallthru
    _

// kernel: transformer_forward_pallas.5
$region0: #{transformer_forward_pallas.5}
  #allocation0 [shape = 'u32[]', space=smem, size = 0x4, offset = 0x4, fixed_abs, tag = 'smem constant byte address 0x4 - core index']
  #allocation1 [shape = 'u32[144,128]{1,0:T(1,128)}', space=vmem, size = 0x12000, scoped, tag = 'internal scratch']
  %s0 = inlined_call_operand.vmem [shape: f32[2,8,32], index: 0, kind: input, shape index: {}]
  %s1 = inlined_call_operand.vmem [shape: f32[8,32], index: 1, kind: input, shape index: {}]
  %s2 = inlined_call_operand.vmem [shape: f32[8,32], index: 2, kind: input, shape index: {}]
  %s3 = inlined_call_operand.vmem [shape: f32[8,32], index: 3, kind: input, shape index: {}]
  %s4 = inlined_call_operand.vmem [shape: f32[32,96], index: 4, kind: input, shape index: {}]
  %s5 = inlined_call_operand.vmem [shape: f32[1,96], index: 5, kind: input, shape index: {}]
  %s6 = inlined_call_operand.vmem [shape: f32[4,8,32], index: 6, kind: input, shape index: {}]
  %s7 = inlined_call_operand.vmem [shape: f32[1,32], index: 7, kind: input, shape index: {}]
  %s8 = inlined_call_operand.vmem [shape: f32[32,64], index: 8, kind: input, shape index: {}]
  %s9 = inlined_call_operand.vmem [shape: f32[1,64], index: 9, kind: input, shape index: {}]
  %s10 = inlined_call_operand.vmem [shape: f32[64,32], index: 10, kind: input, shape index: {}]
  %s11 = inlined_call_operand.vmem [shape: f32[1,32], index: 11, kind: input, shape index: {}]
  %s12 = inlined_call_operand.vmem [shape: f32[1,32], index: 12, kind: input, shape index: {}]
  %s13 = inlined_call_operand.vmem [shape: f32[1,32], index: 13, kind: input, shape index: {}]
  %s14 = inlined_call_operand.vmem [shape: f32[1,32], index: 14, kind: input, shape index: {}]
  %s15 = inlined_call_operand.vmem [shape: f32[1,32], index: 15, kind: input, shape index: {}]
  %s16 = inlined_call_operand.vmem [shape: f32[2,8,32], index: 16, kind: output, shape index: {}]
  %s17 = sld [smem:[#allocation0]]
  $region97: #{transformer_forward_pallas.5} parent=0
    _
  %s19 = ssub.s32 1, %s17
  %s20 = scalar_select 0, %s19, %s17
  loop: start=0, step=1, limit=4
  $region2: #{transformer_forward_pallas.5} parent=0 // loop_pre_header
    _
  $region3: #{transformer_forward_pallas.5} parent=0 // loop_header
    %s22 = sphi 0, %s26
    %p23 = scmp.ge.s32.totalorder %s22, 4
    %s32 = sphi 0, %s34
    %s35 = sphi 0, %s32
    %s36 = sphi 0, %s35
    %s52 = sphi 0, %s36
    %s56 = sphi 0, %s56
    %s58 = sphi 0, %s56
    %s59 = sphi 0, %s58
    %s73 = sphi 0, %s59
    %s77 = sphi 0, %s77
    %s79 = sphi 0, %s77
    %s80 = sphi 0, %s79
    %s94 = sphi 0, %s80
    %s98 = sphi 0, %s98
    %s100 = sphi 0, %s98
    %s101 = sphi 0, %s100
    %s115 = sphi 0, %s101
    %s119 = sphi 0, %s119
    %s121 = sphi 0, %s119
    %s122 = sphi 0, %s121
    %s136 = sphi 0, %s122
    %s140 = sphi 0, %s140
    %s142 = sphi 0, %s140
    %s143 = sphi 0, %s142
    %s157 = sphi 0, %s143
    %s161 = sphi 0, %s161
    %s163 = sphi 0, %s161
    %s164 = sphi 0, %s163
    %s178 = sphi 0, %s164
    %s182 = sphi 0, %s182
    %s184 = sphi 0, %s182
    %s185 = sphi 0, %s184
    %s199 = sphi 0, %s185
    %s203 = sphi 0, %s203
    %s205 = sphi 0, %s203
    %s206 = sphi 0, %s205
    %s220 = sphi 0, %s206
    %s224 = sphi 0, %s224
    %s226 = sphi 0, %s224
    %s227 = sphi 0, %s226
    %s241 = sphi 0, %s227
    %s245 = sphi 0, %s245
    %s247 = sphi 0, %s245
    %s248 = sphi 0, %s247
    %s262 = sphi 0, %s248
    %s266 = sphi 0, %s266
    %s268 = sphi 0, %s266
    %s269 = sphi 0, %s268
    %s283 = sphi 0, %s269
    %s287 = sphi 0, %s287
    %s289 = sphi 0, %s287
    %s290 = sphi 0, %s289
    %s304 = sphi 0, %s290
    %s308 = sphi 0, %s308
    %s310 = sphi 0, %s308
    %s311 = sphi 0, %s310
    %s325 = sphi 0, %s311
    %s329 = sphi 0, %s329
    %s331 = sphi 0, %s329
    %s332 = sphi 0, %s331
    %s346 = sphi 0, %s332
    %s350 = sphi 0, %s350
    %s352 = sphi 0, %s350
    %s353 = sphi 0, %s352
    %s367 = sphi 0, %s353
    %s373 = sphi 0, %s375
    %s376 = sphi 0, %s373
    %s377 = sphi 0, %s376
    %s393 = sphi 0, %s377
  $region4: #{transformer_forward_pallas.5} parent=0 // loop_header_branch
    %25 = sbr.rel (%p23) target = $region8
  $region5: #{transformer_forward_pallas.5} parent=0 // loop_body
    %s27 = ssub.s32 %s22, 1
    %s28 = ssub.s32 %s22, 2
    %s29 = sadd.s32 %s22, 1
    %s30 = ssub.s32 %s22, %s29
    %p31 = scmp.eq.s32.totalorder %s30, 0
    %s33 = sadd.s32 %s32, 1
    %s34 = scalar_select %p31, %s32, %s33
    %p37 = pneg %p31
    %p38 = scmp.eq.s32.totalorder %s22, 1
    %p39 = por %p37, %p38
    %p40 = scmp.ne.s32.totalorder %s32, %s35
    %p41 = scmp.eq.s32.totalorder %s22, 0
    %p42 = por %p40, %p41
    %p43 = scmp.ne.s32.totalorder %s32, %s35
    %p44 = scmp.eq.s32.totalorder %s27, 1
    %p45 = por %p43, %p44
    %p46 = scmp.ne.s32.totalorder %s35, %s36
    %p47 = scmp.eq.s32.totalorder %s27, 0
    %p48 = por %p46, %p47
    %p49 = scmp.ne.s32.totalorder %s35, %s36
    %p50 = scmp.eq.s32.totalorder %s28, 1
    %p51 = por %p49, %p50
    %p53 = scmp.ne.s32.totalorder %s36, %s52
    %p54 = scmp.eq.s32.totalorder %s28, 0
    %p55 = por %p53, %p54
    %s57 = sadd.s32 %s56, 1
    %p60 = scmp.eq.s32.totalorder %s22, 1
    %p61 = scmp.ne.s32.totalorder %s56, %s58
    %p62 = scmp.eq.s32.totalorder %s22, 0
    %p63 = por %p61, %p62
    %p64 = scmp.ne.s32.totalorder %s56, %s58
    %p65 = scmp.eq.s32.totalorder %s27, 1
    %p66 = por %p64, %p65
    %p67 = scmp.ne.s32.totalorder %s58, %s59
    %p68 = scmp.eq.s32.totalorder %s27, 0
    %p69 = por %p67, %p68
    %p70 = scmp.ne.s32.totalorder %s58, %s59
    %p71 = scmp.eq.s32.totalorder %s28, 1
    %p72 = por %p70, %p71
    %p74 = scmp.ne.s32.totalorder %s59, %s73
    %p75 = scmp.eq.s32.totalorder %s28, 0
    %p76 = por %p74, %p75
    %s78 = sadd.s32 %s77, 1
    %p81 = scmp.eq.s32.totalorder %s22, 1
    %p82 = scmp.ne.s32.totalorder %s77, %s79
    %p83 = scmp.eq.s32.totalorder %s22, 0
    %p84 = por %p82, %p83
    %p85 = scmp.ne.s32.totalorder %s77, %s79
    %p86 = scmp.eq.s32.totalorder %s27, 1
    %p87 = por %p85, %p86
    %p88 = scmp.ne.s32.totalorder %s79, %s80
    %p89 = scmp.eq.s32.totalorder %s27, 0
    %p90 = por %p88, %p89
    %p91 = scmp.ne.s32.totalorder %s79, %s80
    %p92 = scmp.eq.s32.totalorder %s28, 1
    %p93 = por %p91, %p92
    %p95 = scmp.ne.s32.totalorder %s80, %s94
    %p96 = scmp.eq.s32.totalorder %s28, 0
    %p97 = por %p95, %p96
    %s99 = sadd.s32 %s98, 1
    %p102 = scmp.eq.s32.totalorder %s22, 1
    %p103 = scmp.ne.s32.totalorder %s98, %s100
    %p104 = scmp.eq.s32.totalorder %s22, 0
    %p105 = por %p103, %p104
    %p106 = scmp.ne.s32.totalorder %s98, %s100
    %p107 = scmp.eq.s32.totalorder %s27, 1
    %p108 = por %p106, %p107
    %p109 = scmp.ne.s32.totalorder %s100, %s101
    %p110 = scmp.eq.s32.totalorder %s27, 0
    %p111 = por %p109, %p110
    %p112 = scmp.ne.s32.totalorder %s100, %s101
    %p113 = scmp.eq.s32.totalorder %s28, 1
    %p114 = por %p112, %p113
    %p116 = scmp.ne.s32.totalorder %s101, %s115
    %p117 = scmp.eq.s32.totalorder %s28, 0
    %p118 = por %p116, %p117
    %s120 = sadd.s32 %s119, 1
    %p123 = scmp.eq.s32.totalorder %s22, 1
    %p124 = scmp.ne.s32.totalorder %s119, %s121
    %p125 = scmp.eq.s32.totalorder %s22, 0
    %p126 = por %p124, %p125
    %p127 = scmp.ne.s32.totalorder %s119, %s121
    %p128 = scmp.eq.s32.totalorder %s27, 1
    %p129 = por %p127, %p128
    %p130 = scmp.ne.s32.totalorder %s121, %s122
    %p131 = scmp.eq.s32.totalorder %s27, 0
    %p132 = por %p130, %p131
    %p133 = scmp.ne.s32.totalorder %s121, %s122
    %p134 = scmp.eq.s32.totalorder %s28, 1
    %p135 = por %p133, %p134
    %p137 = scmp.ne.s32.totalorder %s122, %s136
    %p138 = scmp.eq.s32.totalorder %s28, 0
    %p139 = por %p137, %p138
    %s141 = sadd.s32 %s140, 1
    %p144 = scmp.eq.s32.totalorder %s22, 1
    %p145 = scmp.ne.s32.totalorder %s140, %s142
    %p146 = scmp.eq.s32.totalorder %s22, 0
    %p147 = por %p145, %p146
    %p148 = scmp.ne.s32.totalorder %s140, %s142
    %p149 = scmp.eq.s32.totalorder %s27, 1
    %p150 = por %p148, %p149
    %p151 = scmp.ne.s32.totalorder %s142, %s143
    %p152 = scmp.eq.s32.totalorder %s27, 0
    %p153 = por %p151, %p152
    %p154 = scmp.ne.s32.totalorder %s142, %s143
    %p155 = scmp.eq.s32.totalorder %s28, 1
    %p156 = por %p154, %p155
    %p158 = scmp.ne.s32.totalorder %s143, %s157
    %p159 = scmp.eq.s32.totalorder %s28, 0
    %p160 = por %p158, %p159
    %s162 = sadd.s32 %s161, 1
    %p165 = scmp.eq.s32.totalorder %s22, 1
    %p166 = scmp.ne.s32.totalorder %s161, %s163
    %p167 = scmp.eq.s32.totalorder %s22, 0
    %p168 = por %p166, %p167
    %p169 = scmp.ne.s32.totalorder %s161, %s163
    %p170 = scmp.eq.s32.totalorder %s27, 1
    %p171 = por %p169, %p170
    %p172 = scmp.ne.s32.totalorder %s163, %s164
    %p173 = scmp.eq.s32.totalorder %s27, 0
    %p174 = por %p172, %p173
    %p175 = scmp.ne.s32.totalorder %s163, %s164
    %p176 = scmp.eq.s32.totalorder %s28, 1
    %p177 = por %p175, %p176
    %p179 = scmp.ne.s32.totalorder %s164, %s178
    %p180 = scmp.eq.s32.totalorder %s28, 0
    %p181 = por %p179, %p180
    %s183 = sadd.s32 %s182, 1
    %p186 = scmp.eq.s32.totalorder %s22, 1
    %p187 = scmp.ne.s32.totalorder %s182, %s184
    %p188 = scmp.eq.s32.totalorder %s22, 0
    %p189 = por %p187, %p188
    %p190 = scmp.ne.s32.totalorder %s182, %s184
    %p191 = scmp.eq.s32.totalorder %s27, 1
    %p192 = por %p190, %p191
    %p193 = scmp.ne.s32.totalorder %s184, %s185
    %p194 = scmp.eq.s32.totalorder %s27, 0
    %p195 = por %p193, %p194
    %p196 = scmp.ne.s32.totalorder %s184, %s185
    %p197 = scmp.eq.s32.totalorder %s28, 1
    %p198 = por %p196, %p197
    %p200 = scmp.ne.s32.totalorder %s185, %s199
    %p201 = scmp.eq.s32.totalorder %s28, 0
    %p202 = por %p200, %p201
    %s204 = sadd.s32 %s203, 1
    %p207 = scmp.eq.s32.totalorder %s22, 1
    %p208 = scmp.ne.s32.totalorder %s203, %s205
    %p209 = scmp.eq.s32.totalorder %s22, 0
    %p210 = por %p208, %p209
    %p211 = scmp.ne.s32.totalorder %s203, %s205
    %p212 = scmp.eq.s32.totalorder %s27, 1
    %p213 = por %p211, %p212
    %p214 = scmp.ne.s32.totalorder %s205, %s206
    %p215 = scmp.eq.s32.totalorder %s27, 0
    %p216 = por %p214, %p215
    %p217 = scmp.ne.s32.totalorder %s205, %s206
    %p218 = scmp.eq.s32.totalorder %s28, 1
    %p219 = por %p217, %p218
    %p221 = scmp.ne.s32.totalorder %s206, %s220
    %p222 = scmp.eq.s32.totalorder %s28, 0
    %p223 = por %p221, %p222
    %s225 = sadd.s32 %s224, 1
    %p228 = scmp.eq.s32.totalorder %s22, 1
    %p229 = scmp.ne.s32.totalorder %s224, %s226
    %p230 = scmp.eq.s32.totalorder %s22, 0
    %p231 = por %p229, %p230
    %p232 = scmp.ne.s32.totalorder %s224, %s226
    %p233 = scmp.eq.s32.totalorder %s27, 1
    %p234 = por %p232, %p233
    %p235 = scmp.ne.s32.totalorder %s226, %s227
    %p236 = scmp.eq.s32.totalorder %s27, 0
    %p237 = por %p235, %p236
    %p238 = scmp.ne.s32.totalorder %s226, %s227
    %p239 = scmp.eq.s32.totalorder %s28, 1
    %p240 = por %p238, %p239
    %p242 = scmp.ne.s32.totalorder %s227, %s241
    %p243 = scmp.eq.s32.totalorder %s28, 0
    %p244 = por %p242, %p243
    %s246 = sadd.s32 %s245, 1
    %p249 = scmp.eq.s32.totalorder %s22, 1
    %p250 = scmp.ne.s32.totalorder %s245, %s247
    %p251 = scmp.eq.s32.totalorder %s22, 0
    %p252 = por %p250, %p251
    %p253 = scmp.ne.s32.totalorder %s245, %s247
    %p254 = scmp.eq.s32.totalorder %s27, 1
    %p255 = por %p253, %p254
    %p256 = scmp.ne.s32.totalorder %s247, %s248
    %p257 = scmp.eq.s32.totalorder %s27, 0
    %p258 = por %p256, %p257
    %p259 = scmp.ne.s32.totalorder %s247, %s248
    %p260 = scmp.eq.s32.totalorder %s28, 1
    %p261 = por %p259, %p260
    %p263 = scmp.ne.s32.totalorder %s248, %s262
    %p264 = scmp.eq.s32.totalorder %s28, 0
    %p265 = por %p263, %p264
    %s267 = sadd.s32 %s266, 1
    %p270 = scmp.eq.s32.totalorder %s22, 1
    %p271 = scmp.ne.s32.totalorder %s266, %s268
    %p272 = scmp.eq.s32.totalorder %s22, 0
    %p273 = por %p271, %p272
    %p274 = scmp.ne.s32.totalorder %s266, %s268
    %p275 = scmp.eq.s32.totalorder %s27, 1
    %p276 = por %p274, %p275
    %p277 = scmp.ne.s32.totalorder %s268, %s269
    %p278 = scmp.eq.s32.totalorder %s27, 0
    %p279 = por %p277, %p278
    %p280 = scmp.ne.s32.totalorder %s268, %s269
    %p281 = scmp.eq.s32.totalorder %s28, 1
    %p282 = por %p280, %p281
    %p284 = scmp.ne.s32.totalorder %s269, %s283
    %p285 = scmp.eq.s32.totalorder %s28, 0
    %p286 = por %p284, %p285
    %s288 = sadd.s32 %s287, 1
    %p291 = scmp.eq.s32.totalorder %s22, 1
    %p292 = scmp.ne.s32.totalorder %s287, %s289
    %p293 = scmp.eq.s32.totalorder %s22, 0
    %p294 = por %p292, %p293
    %p295 = scmp.ne.s32.totalorder %s287, %s289
    %p296 = scmp.eq.s32.totalorder %s27, 1
    %p297 = por %p295, %p296
    %p298 = scmp.ne.s32.totalorder %s289, %s290
    %p299 = scmp.eq.s32.totalorder %s27, 0
    %p300 = por %p298, %p299
    %p301 = scmp.ne.s32.totalorder %s289, %s290
    %p302 = scmp.eq.s32.totalorder %s28, 1
    %p303 = por %p301, %p302
    %p305 = scmp.ne.s32.totalorder %s290, %s304
    %p306 = scmp.eq.s32.totalorder %s28, 0
    %p307 = por %p305, %p306
    %s309 = sadd.s32 %s308, 1
    %p312 = scmp.eq.s32.totalorder %s22, 1
    %p313 = scmp.ne.s32.totalorder %s308, %s310
    %p314 = scmp.eq.s32.totalorder %s22, 0
    %p315 = por %p313, %p314
    %p316 = scmp.ne.s32.totalorder %s308, %s310
    %p317 = scmp.eq.s32.totalorder %s27, 1
    %p318 = por %p316, %p317
    %p319 = scmp.ne.s32.totalorder %s310, %s311
    %p320 = scmp.eq.s32.totalorder %s27, 0
    %p321 = por %p319, %p320
    %p322 = scmp.ne.s32.totalorder %s310, %s311
    %p323 = scmp.eq.s32.totalorder %s28, 1
    %p324 = por %p322, %p323
    %p326 = scmp.ne.s32.totalorder %s311, %s325
    %p327 = scmp.eq.s32.totalorder %s28, 0
    %p328 = por %p326, %p327
    %s330 = sadd.s32 %s329, 1
    %p333 = scmp.eq.s32.totalorder %s22, 1
    %p334 = scmp.ne.s32.totalorder %s329, %s331
    %p335 = scmp.eq.s32.totalorder %s22, 0
    %p336 = por %p334, %p335
    %p337 = scmp.ne.s32.totalorder %s329, %s331
    %p338 = scmp.eq.s32.totalorder %s27, 1
    %p339 = por %p337, %p338
    %p340 = scmp.ne.s32.totalorder %s331, %s332
    %p341 = scmp.eq.s32.totalorder %s27, 0
    %p342 = por %p340, %p341
    %p343 = scmp.ne.s32.totalorder %s331, %s332
    %p344 = scmp.eq.s32.totalorder %s28, 1
    %p345 = por %p343, %p344
    %p347 = scmp.ne.s32.totalorder %s332, %s346
    %p348 = scmp.eq.s32.totalorder %s28, 0
    %p349 = por %p347, %p348
    %s351 = sadd.s32 %s350, 1
    %p354 = scmp.eq.s32.totalorder %s22, 1
    %p355 = scmp.ne.s32.totalorder %s350, %s352
    %p356 = scmp.eq.s32.totalorder %s22, 0
    %p357 = por %p355, %p356
    %p358 = scmp.ne.s32.totalorder %s350, %s352
    %p359 = scmp.eq.s32.totalorder %s27, 1
    %p360 = por %p358, %p359
    %p361 = scmp.ne.s32.totalorder %s352, %s353
    %p362 = scmp.eq.s32.totalorder %s27, 0
    %p363 = por %p361, %p362
    %p364 = scmp.ne.s32.totalorder %s352, %s353
    %p365 = scmp.eq.s32.totalorder %s28, 1
    %p366 = por %p364, %p365
    %p368 = scmp.ne.s32.totalorder %s353, %s367
    %p369 = scmp.eq.s32.totalorder %s28, 0
    %p370 = por %p368, %p369
    %s371 = ssub.s32 %s22, %s29
    %p372 = scmp.eq.s32.totalorder %s371, 0
    %s374 = sadd.s32 %s373, 1
    %s375 = scalar_select %p372, %s373, %s374
    %p378 = pneg %p372
    %p379 = scmp.eq.s32.totalorder %s22, 1
    %p380 = por %p378, %p379
    %p381 = scmp.ne.s32.totalorder %s373, %s376
    %p382 = scmp.eq.s32.totalorder %s22, 0
    %p383 = por %p381, %p382
    %p384 = scmp.ne.s32.totalorder %s373, %s376
    %p385 = scmp.eq.s32.totalorder %s27, 1
    %p386 = por %p384, %p385
    %p387 = scmp.ne.s32.totalorder %s376, %s377
    %p388 = scmp.eq.s32.totalorder %s27, 0
    %p389 = por %p387, %p388
    %p390 = scmp.ne.s32.totalorder %s376, %s377
    %p391 = scmp.eq.s32.totalorder %s28, 1
    %p392 = por %p390, %p391
    %p394 = scmp.ne.s32.totalorder %s377, %s393
    %p395 = scmp.eq.s32.totalorder %s28, 0
    %p396 = por %p394, %p395
    %p397 = scmp.le.s32.totalorder 1, %s22
    %p398 = scmp.lt.s32.totalorder %s22, 3
    %p399 = pnand %p397, %p398
    %p400 = pneg %p399
    // Predicated region
    $region9: #{transformer_forward_pallas.5} parent=5 // pred_check
      _
    $region10: #{transformer_forward_pallas.5} parent=5 // pred_check_branch
      %402 = sbr.rel (%p399) target = $region12
    $region11: #{transformer_forward_pallas.5} parent=5 // pred_region
      %s403 = ssub.s32 %s22, 1
      // Predicated region
      $region13: #{transformer_forward_pallas.5} parent=11 // pred_check
        %p404 = pneg %p69
      $region14: #{transformer_forward_pallas.5} parent=11 // pred_check_branch
        %406 = sbr.rel (%p404) target = $region16
      $region15: #{transformer_forward_pallas.5} parent=11 // pred_region
        _
      $region16: #{transformer_forward_pallas.5} parent=11 // pred_fallthru
        _
      // Predicated region
      $region17: #{transformer_forward_pallas.5} parent=11 // pred_check
        %p407 = pneg %p90
      $region18: #{transformer_forward_pallas.5} parent=11 // pred_check_branch
        %409 = sbr.rel (%p407) target = $region20
      $region19: #{transformer_forward_pallas.5} parent=11 // pred_region
        _
      $region20: #{transformer_forward_pallas.5} parent=11 // pred_fallthru
        _
      // Predicated region
      $region21: #{transformer_forward_pallas.5} parent=11 // pred_check
        %p410 = pneg %p111
      $region22: #{transformer_forward_pallas.5} parent=11 // pred_check_branch
        %412 = sbr.rel (%p410) target = $region24
      $region23: #{transformer_forward_pallas.5} parent=11 // pred_region
        _
      $region24: #{transformer_forward_pallas.5} parent=11 // pred_fallthru
        _
      // Predicated region
      $region25: #{transformer_forward_pallas.5} parent=11 // pred_check
        %p413 = pneg %p132
      $region26: #{transformer_forward_pallas.5} parent=11 // pred_check_branch
        %415 = sbr.rel (%p413) target = $region28
      $region27: #{transformer_forward_pallas.5} parent=11 // pred_region
        _
      $region28: #{transformer_forward_pallas.5} parent=11 // pred_fallthru
        _
      // Predicated region
      $region29: #{transformer_forward_pallas.5} parent=11 // pred_check
        %p416 = pneg %p153
      $region30: #{transformer_forward_pallas.5} parent=11 // pred_check_branch
        %418 = sbr.rel (%p416) target = $region32
      $region31: #{transformer_forward_pallas.5} parent=11 // pred_region
        _
      $region32: #{transformer_forward_pallas.5} parent=11 // pred_fallthru
        _
      // Predicated region
      $region33: #{transformer_forward_pallas.5} parent=11 // pred_check
        %p419 = pneg %p174
      $region34: #{transformer_forward_pallas.5} parent=11 // pred_check_branch
        %421 = sbr.rel (%p419) target = $region36
      $region35: #{transformer_forward_pallas.5} parent=11 // pred_region
        _
      $region36: #{transformer_forward_pallas.5} parent=11 // pred_fallthru
        _
      // Predicated region
      $region37: #{transformer_forward_pallas.5} parent=11 // pred_check
        %p422 = pneg %p195
      $region38: #{transformer_forward_pallas.5} parent=11 // pred_check_branch
        %424 = sbr.rel (%p422) target = $region40
      $region39: #{transformer_forward_pallas.5} parent=11 // pred_region
        _
      $region40: #{transformer_forward_pallas.5} parent=11 // pred_fallthru
        _
      // Predicated region
      $region41: #{transformer_forward_pallas.5} parent=11 // pred_check
        %p425 = pneg %p216
      $region42: #{transformer_forward_pallas.5} parent=11 // pred_check_branch
        %427 = sbr.rel (%p425) target = $region44
      $region43: #{transformer_forward_pallas.5} parent=11 // pred_region
        _
      $region44: #{transformer_forward_pallas.5} parent=11 // pred_fallthru
        _
      // Predicated region
      $region45: #{transformer_forward_pallas.5} parent=11 // pred_check
        %p428 = pneg %p237
      $region46: #{transformer_forward_pallas.5} parent=11 // pred_check_branch
        %430 = sbr.rel (%p428) target = $region48
      $region47: #{transformer_forward_pallas.5} parent=11 // pred_region
        _
      $region48: #{transformer_forward_pallas.5} parent=11 // pred_fallthru
        _
      // Predicated region
      $region49: #{transformer_forward_pallas.5} parent=11 // pred_check
        %p431 = pneg %p258
      $region50: #{transformer_forward_pallas.5} parent=11 // pred_check_branch
        %433 = sbr.rel (%p431) target = $region52
      $region51: #{transformer_forward_pallas.5} parent=11 // pred_region
        _
      $region52: #{transformer_forward_pallas.5} parent=11 // pred_fallthru
        _
      // Predicated region
      $region53: #{transformer_forward_pallas.5} parent=11 // pred_check
        %p434 = pneg %p279
      $region54: #{transformer_forward_pallas.5} parent=11 // pred_check_branch
        %436 = sbr.rel (%p434) target = $region56
      $region55: #{transformer_forward_pallas.5} parent=11 // pred_region
        _
      $region56: #{transformer_forward_pallas.5} parent=11 // pred_fallthru
        _
      // Predicated region
      $region57: #{transformer_forward_pallas.5} parent=11 // pred_check
        %p437 = pneg %p300
      $region58: #{transformer_forward_pallas.5} parent=11 // pred_check_branch
        %439 = sbr.rel (%p437) target = $region60
      $region59: #{transformer_forward_pallas.5} parent=11 // pred_region
        _
      $region60: #{transformer_forward_pallas.5} parent=11 // pred_fallthru
        _
      // Predicated region
      $region61: #{transformer_forward_pallas.5} parent=11 // pred_check
        %p440 = pneg %p321
      $region62: #{transformer_forward_pallas.5} parent=11 // pred_check_branch
        %442 = sbr.rel (%p440) target = $region64
      $region63: #{transformer_forward_pallas.5} parent=11 // pred_region
        _
      $region64: #{transformer_forward_pallas.5} parent=11 // pred_fallthru
        _
      // Predicated region
      $region65: #{transformer_forward_pallas.5} parent=11 // pred_check
        %p443 = pneg %p342
      $region66: #{transformer_forward_pallas.5} parent=11 // pred_check_branch
        %445 = sbr.rel (%p443) target = $region68
      $region67: #{transformer_forward_pallas.5} parent=11 // pred_region
        _
      $region68: #{transformer_forward_pallas.5} parent=11 // pred_fallthru
        _
      // Predicated region
      $region69: #{transformer_forward_pallas.5} parent=11 // pred_check
        %p446 = pneg %p363
      $region70: #{transformer_forward_pallas.5} parent=11 // pred_check_branch
        %448 = sbr.rel (%p446) target = $region72
      $region71: #{transformer_forward_pallas.5} parent=11 // pred_region
        _
      $region72: #{transformer_forward_pallas.5} parent=11 // pred_fallthru
        _
    $region12: #{transformer_forward_pallas.5} parent=5 // pred_fallthru
      _
    %p449 = scmp.lt.s32.totalorder %s22, 2
    // Predicated region
    $region73: #{transformer_forward_pallas.5} parent=5 // pred_check
      %p450 = pneg %p449
    $region74: #{transformer_forward_pallas.5} parent=5 // pred_check_branch
      %452 = sbr.rel (%p450) target = $region76
    $region75: #{transformer_forward_pallas.5} parent=5 // pred_region
      // Predicated region
      $region77: #{transformer_forward_pallas.5} parent=75 // pred_check
        %p453 = pneg %p42
      $region78: #{transformer_forward_pallas.5} parent=75 // pred_check_branch
        %455 = sbr.rel (%p453) target = $region80
      $region79: #{transformer_forward_pallas.5} parent=75 // pred_region
        %p456 = scmp.lt.s32.totalorder %s22, 1
        %s457 = scalar_select %p456, %s22, 1
        %s458 = smul.addr %s457, 8
        %s459 = scalar_lea.vmem %s0, %s458
      $region80: #{transformer_forward_pallas.5} parent=75 // pred_fallthru
        _
    $region76: #{transformer_forward_pallas.5} parent=5 // pred_fallthru
      _
    %p460 = scmp.le.s32.totalorder 1, %s22
    %p461 = scmp.lt.s32.totalorder %s22, 3
    %p462 = pnand %p460, %p461
    %p463 = pneg %p462
    // Predicated region
    $region81: #{transformer_forward_pallas.5} parent=5 // pred_check
      _
    $region82: #{transformer_forward_pallas.5} parent=5 // pred_check_branch
      %465 = sbr.rel (%p462) target = $region84
    $region83: #{transformer_forward_pallas.5} parent=5 // pred_region
      %s466 = ssub.s32 %s22, 1
      %p467 = scmp.lt.s32.totalorder %s27, 1
      %s468 = scalar_select %p467, %s27, 1
      %s469 = smul.addr %s468, 8
      %s470 = scalar_lea.vmem %s0, %s469
      %p471 = pneg %p48
      %p472 = pneg %p45
      %p473 = pneg %p69
      %p474 = pneg %p66
      %p475 = pneg %p90
      %p476 = pneg %p87
      %p477 = pneg %p111
      %p478 = pneg %p108
      %p479 = pneg %p132
      %p480 = pneg %p129
      %p481 = pneg %p153
      %p482 = pneg %p150
      %p483 = pneg %p174
      %p484 = pneg %p171
      %p485 = pneg %p195
      %p486 = pneg %p192
      %p487 = pneg %p216
      %p488 = pneg %p213
      %p489 = pneg %p237
      %p490 = pneg %p234
      %p491 = pneg %p258
      %p492 = pneg %p255
      %p493 = pneg %p279
      %p494 = pneg %p276
      %p495 = pneg %p300
      %p496 = pneg %p297
      %p497 = pneg %p321
      %p498 = pneg %p318
      %p499 = pneg %p342
      %p500 = pneg %p339
      %p501 = pneg %p363
      %p502 = pneg %p360
      %p503 = pneg %p389
      %p504 = pneg %p386
      %p505 = scmp.lt.s32.totalorder %s27, 1
      %s506 = scalar_select %p505, %s27, 1
      %s507 = smul.addr %s506, 8
      %s508 = scalar_lea.vmem %s16, %s507
      %p509 = scmp.lt.s32.totalorder %s27, 1
      %s510 = scalar_select %p509, %s27, 1
      %s511 = smul.addr %s510, 8
      %s512 = scalar_lea.vmem %s0, %s511
      %p513 = scmp.lt.s32.totalorder %s27, 1
      %s514 = scalar_select %p513, %s27, 1
      %s515 = smul.addr %s514, 8
      %s516 = scalar_lea.vmem %s16, %s515
      %v517 = vld [vmem:[%s512] sm:$0xff]
      %v518 = vld [vmem:[%s1] sm:$0xff]
      %v519 = vld [vmem:[%s2] sm:$0xff]
      %v520 = vld [vmem:[%s3] sm:$0xff]
      %v521 = vld [vmem:[%s4] sm:$0xff]
      %v522 = vld [vmem:[%s4 + $0x8] sm:$0xff]
      %v523 = vld [vmem:[%s4 + $0x10] sm:$0xff]
      %v524 = vld [vmem:[%s4 + $0x18] sm:$0xff]
      %v525 = vld [vmem:[%s5] sm:$0x1]
      %v527 = vlaneseq
      %v528 = vshrl.u32 %v527, 7
      %v529 = vsub.s32 0, %v528
      %v530 = vrot.slane %v525, %v529
      %vm532 = vcmask 261120
      %v534 = vsel %vm532, %v517, 0
      %536 = vmatprep.subr.mxu0 0.0
      %537 = vmatpush1.msra.mxu0 0.0
      %538 = vmatprep.subr.mxu0 0.0
      %539 = vmatpush1.msra.mxu0 0.0
      %540 = vmatprep.subr.mxu0 0.0
      %541 = vmatpush1.msra.mxu0 0.0
      %542 = vmatprep.subr.mxu0 0.0
      %543 = vmatpush1.msra.mxu0 0.0
      %544 = vmatprep.subr.mxu0 0.0
      %545 = vmatpush1.msra.mxu0 0.0
      %546 = vmatprep.subr.mxu0 0.0
      %547 = vmatpush1.msra.mxu0 0.0
      %548 = vmatprep.subr.mxu0 0.0
      %549 = vmatpush1.msra.mxu0 0.0
      %550 = vmatprep.subr.mxu0 0.0
      %551 = vmatpush1.msra.mxu0 0.0
      %552 = vmatprep.subr.mxu0 0.0
      %553 = vmatpush1.msra.mxu0 0.0
      %554 = vmatprep.subr.mxu0 0.0
      %555 = vmatpush1.msra.mxu0 0.0
      %556 = vmatprep.subr.mxu0 0.0
      %557 = vmatpush1.msra.mxu0 0.0
      %558 = vmatprep.subr.mxu0 0.0
      %559 = vmatpush1.msra.mxu0 0.0
      %560 = vmatprep.subr.mxu0 0.0
      %561 = vmatpush1.msra.mxu0 %v524
      %562 = vmatprep.subr.mxu0 0.0
      %563 = vmatpush1.msra.mxu0 %v523
      %564 = vmatprep.subr.mxu0 0.0
      %565 = vmatpush1.msra.mxu0 %v522
      %566 = vmatprep.subr.mxu0 0.0
      %567 = vmatpush1.msra.mxu0 %v521
      %568 = vmatprep.subr.mxu0 0.0
      %569 = vmatpush2.msra.mxu0 0.0
      %570 = vmatprep.subr.mxu0 0.0
      %571 = vmatpush2.msra.mxu0 0.0
      %572 = vmatprep.subr.mxu0 0.0
      %573 = vmatpush2.msra.mxu0 0.0
      %574 = vmatprep.subr.mxu0 0.0
      %575 = vmatpush2.msra.mxu0 0.0
      %576 = vmatprep.subr.mxu0 0.0
      %577 = vmatpush2.msra.mxu0 0.0
      %578 = vmatprep.subr.mxu0 0.0
      %579 = vmatpush2.msra.mxu0 0.0
      %580 = vmatprep.subr.mxu0 0.0
      %581 = vmatpush2.msra.mxu0 0.0
      %582 = vmatprep.subr.mxu0 0.0
      %583 = vmatpush2.msra.mxu0 0.0
      %584 = vmatprep.subr.mxu0 0.0
      %585 = vmatpush2.msra.mxu0 0.0
      %586 = vmatprep.subr.mxu0 0.0
      %587 = vmatpush2.msra.mxu0 0.0
      %588 = vmatprep.subr.mxu0 0.0
      %589 = vmatpush2.msra.mxu0 0.0
      %590 = vmatprep.subr.mxu0 0.0
      %591 = vmatpush2.msra.mxu0 0.0
      %592 = vmatprep.subr.mxu0 0.0
      %593 = vmatpush2.msra.mxu0 0.0
      %594 = vmatprep.subr.mxu0 0.0
      %595 = vmatpush2.msra.mxu0 0.0
      %596 = vmatprep.subr.mxu0 0.0
      %597 = vmatpush2.msra.mxu0 0.0
      %598 = vmatprep.subr.mxu0 0.0
      %599 = vmatpush2.msra.mxu0 0.0
      %600 = vmatprep.mubr.f32.mxu0 0.0
      %601 = vmatmul.mubr.f32.gmra.mxu0 %v534
      %v602 = vpop.f32.mrf.mxu0
      %v603 = vadd.f32 %v530, %v602
      %v604 = vpop.f32.mrf.mxu0
      %605 = vdwg.mxu0
      %v606 = vmul.f32 %v603, %v518
      %608 = vrot.lane.b32.xlu0 %v603, 127
      %v609 = vpop.permute.xlu0 %608
      %611 = vrot.lane.b32.xlu0 %v603, 31
      %v612 = vpop.permute.xlu0 %611
      %vm614 = vcmask 252928
      %v615 = vsel %vm614, %v609, %v612
      %v616 = vmul.f32 %v615, %v519
      %v617 = vadd.f32 %v606, %v616
      %618 = vrot.lane.b32.xlu0 %v603, 97
      %v619 = vpop.permute.xlu0 %618
      %621 = vrot.lane.b32.xlu0 %v603, 1
      %v622 = vpop.permute.xlu0 %621
      %vm624 = vcmask 7168
      %v625 = vsel %vm624, %v619, %v622
      %v626 = vmul.f32 %v625, %v520
      %v627 = vadd.f32 %v617, %v626
      %629 = vrot.lane.b32.xlu0 %v518, 32
      %v630 = vpop.permute.xlu0 %629
      %v632 = vmul.f32 %v603, %v630
      %633 = vrot.lane.b32.xlu0 %v603, 95
      %v634 = vpop.permute.xlu0 %633
      %v636 = vsel %vm614, %v634, %v609
      %v637 = vmul.f32 %v636, %v519
      %639 = vrot.lane.b32.xlu0 %v637, 32
      %v640 = vpop.permute.xlu0 %639
      %v642 = vadd.f32 %v632, %v640
      %643 = vrot.lane.b32.xlu0 %v603, 65
      %v644 = vpop.permute.xlu0 %643
      %v646 = vsel %vm624, %v644, %v619
      %v647 = vmul.f32 %v646, %v520
      %649 = vrot.lane.b32.xlu0 %v647, 32
      %v650 = vpop.permute.xlu0 %649
      %v652 = vadd.f32 %v642, %v650
      %654 = vrot.lane.b32.xlu0 %v627, 120
      %v655 = vpop.permute.xlu0 %654
      %656 = vrot.lane.b32.xlu0 %v627, 112
      %v657 = vpop.permute.xlu0 %656
      %658 = vrot.lane.b32.xlu0 %v627, 104
      %v659 = vpop.permute.xlu0 %658
      %661 = vrot.lane.b32.xlu0 %v652, 120
      %v662 = vpop.permute.xlu0 %661
      %663 = vrot.lane.b32.xlu0 %v652, 112
      %v664 = vpop.permute.xlu0 %663
      %665 = vrot.lane.b32.xlu0 %v652, 104
      %v666 = vpop.permute.xlu0 %665
      %667 = vrot.lane.b32.xlu0 %v603, 120
      %v668 = vpop.permute.xlu0 %667
      %669 = vrot.lane.b32.xlu0 %v603, 112
      %v670 = vpop.permute.xlu0 %669
      %671 = vrot.lane.b32.xlu0 %v603, 104
      %v672 = vpop.permute.xlu0 %671
      %673 = vrot.lane.b32.xlu0 %v652, 96
      %v674 = vpop.permute.xlu0 %673
      %vm675 = vcmask 64512
      %v676 = vsel %vm675, %v627, 0
      %v678 = vsel %vm675, %v674, 0
      %680 = vmatprep.subr.mxu0 0.0
      %681 = vmatpush1.xpose.msra.mxu0 0.0
      %682 = vmatprep.subr.mxu0 0.0
      %683 = vmatpush1.xpose.msra.mxu0 0.0
      %684 = vmatprep.subr.mxu0 0.0
      %685 = vmatpush1.xpose.msra.mxu0 0.0
      %686 = vmatprep.subr.mxu0 0.0
      %687 = vmatpush1.xpose.msra.mxu0 0.0
      %688 = vmatprep.subr.mxu0 0.0
      %689 = vmatpush1.xpose.msra.mxu0 0.0
      %690 = vmatprep.subr.mxu0 0.0
      %691 = vmatpush1.xpose.msra.mxu0 0.0
      %692 = vmatprep.subr.mxu0 0.0
      %693 = vmatpush1.xpose.msra.mxu0 0.0
      %694 = vmatprep.subr.mxu0 0.0
      %695 = vmatpush1.xpose.msra.mxu0 0.0
      %696 = vmatprep.subr.mxu0 0.0
      %697 = vmatpush1.xpose.msra.mxu0 0.0
      %698 = vmatprep.subr.mxu0 0.0
      %699 = vmatpush1.xpose.msra.mxu0 0.0
      %700 = vmatprep.subr.mxu0 0.0
      %701 = vmatpush1.xpose.msra.mxu0 0.0
      %702 = vmatprep.subr.mxu0 0.0
      %703 = vmatpush1.xpose.msra.mxu0 0.0
      %704 = vmatprep.subr.mxu0 0.0
      %705 = vmatpush1.xpose.msra.mxu0 0.0
      %706 = vmatprep.subr.mxu0 0.0
      %707 = vmatpush1.xpose.msra.mxu0 0.0
      %708 = vmatprep.subr.mxu0 0.0
      %709 = vmatpush1.xpose.msra.mxu0 0.0
      %710 = vmatprep.subr.mxu0 0.0
      %711 = vmatpush1.xpose.msra.mxu0 %v678
      %712 = vmatprep.subr.mxu0 0.0
      %713 = vmatpush2.xpose.msra.mxu0 0.0
      %714 = vmatprep.subr.mxu0 0.0
      %715 = vmatpush2.xpose.msra.mxu0 0.0
      %716 = vmatprep.subr.mxu0 0.0
      %717 = vmatpush2.xpose.msra.mxu0 0.0
      %718 = vmatprep.subr.mxu0 0.0
      %719 = vmatpush2.xpose.msra.mxu0 0.0
      %720 = vmatprep.subr.mxu0 0.0
      %721 = vmatpush2.xpose.msra.mxu0 0.0
      %722 = vmatprep.subr.mxu0 0.0
      %723 = vmatpush2.xpose.msra.mxu0 0.0
      %724 = vmatprep.subr.mxu0 0.0
      %725 = vmatpush2.xpose.msra.mxu0 0.0
      %726 = vmatprep.subr.mxu0 0.0
      %727 = vmatpush2.xpose.msra.mxu0 0.0
      %728 = vmatprep.subr.mxu0 0.0
      %729 = vmatpush2.xpose.msra.mxu0 0.0
      %730 = vmatprep.subr.mxu0 0.0
      %731 = vmatpush2.xpose.msra.mxu0 0.0
      %732 = vmatprep.subr.mxu0 0.0
      %733 = vmatpush2.xpose.msra.mxu0 0.0
      %734 = vmatprep.subr.mxu0 0.0
      %735 = vmatpush2.xpose.msra.mxu0 0.0
      %736 = vmatprep.subr.mxu0 0.0
      %737 = vmatpush2.xpose.msra.mxu0 0.0
      %738 = vmatprep.subr.mxu0 0.0
      %739 = vmatpush2.xpose.msra.mxu0 0.0
      %740 = vmatprep.subr.mxu0 0.0
      %741 = vmatpush2.xpose.msra.mxu0 0.0
      %742 = vmatprep.subr.mxu0 0.0
      %743 = vmatpush2.xpose.msra.mxu0 0.0
      %744 = vmatprep.mubr.f32.mxu0 0.0
      %745 = vmatmul.mubr.f32.gmra.mxu0 %v676
      %v746 = vpop.f32.mrf.mxu0
      %v747 = vadd.f32 0.0, %v746
      %v748 = vpop.f32.mrf.mxu0
      %749 = vdwg.mxu0
      %750 = vrot.lane.b32.xlu0 %v662, 96
      %v751 = vpop.permute.xlu0 %750
      %v752 = vsel %vm675, %v655, 0
      %v754 = vsel %vm675, %v751, 0
      %756 = vmatprep.subr.mxu0 0.0
      %757 = vmatpush1.xpose.msra.mxu0 0.0
      %758 = vmatprep.subr.mxu0 0.0
      %759 = vmatpush1.xpose.msra.mxu0 0.0
      %760 = vmatprep.subr.mxu0 0.0
      %761 = vmatpush1.xpose.msra.mxu0 0.0
      %762 = vmatprep.subr.mxu0 0.0
      %763 = vmatpush1.xpose.msra.mxu0 0.0
      %764 = vmatprep.subr.mxu0 0.0
      %765 = vmatpush1.xpose.msra.mxu0 0.0
      %766 = vmatprep.subr.mxu0 0.0
      %767 = vmatpush1.xpose.msra.mxu0 0.0
      %768 = vmatprep.subr.mxu0 0.0
      %769 = vmatpush1.xpose.msra.mxu0 0.0
      %770 = vmatprep.subr.mxu0 0.0
      %771 = vmatpush1.xpose.msra.mxu0 0.0
      %772 = vmatprep.subr.mxu0 0.0
      %773 = vmatpush1.xpose.msra.mxu0 0.0
      %774 = vmatprep.subr.mxu0 0.0
      %775 = vmatpush1.xpose.msra.mxu0 0.0
      %776 = vmatprep.subr.mxu0 0.0
      %777 = vmatpush1.xpose.msra.mxu0 0.0
      %778 = vmatprep.subr.mxu0 0.0
      %779 = vmatpush1.xpose.msra.mxu0 0.0
      %780 = vmatprep.subr.mxu0 0.0
      %781 = vmatpush1.xpose.msra.mxu0 0.0
      %782 = vmatprep.subr.mxu0 0.0
      %783 = vmatpush1.xpose.msra.mxu0 0.0
      %784 = vmatprep.subr.mxu0 0.0
      %785 = vmatpush1.xpose.msra.mxu0 0.0
      %786 = vmatprep.subr.mxu0 0.0
      %787 = vmatpush1.xpose.msra.mxu0 %v754
      %788 = vmatprep.subr.mxu0 0.0
      %789 = vmatpush2.xpose.msra.mxu0 0.0
      %790 = vmatprep.subr.mxu0 0.0
      %791 = vmatpush2.xpose.msra.mxu0 0.0
      %792 = vmatprep.subr.mxu0 0.0
      %793 = vmatpush2.xpose.msra.mxu0 0.0
      %794 = vmatprep.subr.mxu0 0.0
      %795 = vmatpush2.xpose.msra.mxu0 0.0
      %796 = vmatprep.subr.mxu0 0.0
      %797 = vmatpush2.xpose.msra.mxu0 0.0
      %798 = vmatprep.subr.mxu0 0.0
      %799 = vmatpush2.xpose.msra.mxu0 0.0
      %800 = vmatprep.subr.mxu0 0.0
      %801 = vmatpush2.xpose.msra.mxu0 0.0
      %802 = vmatprep.subr.mxu0 0.0
      %803 = vmatpush2.xpose.msra.mxu0 0.0
      %804 = vmatprep.subr.mxu0 0.0
      %805 = vmatpush2.xpose.msra.mxu0 0.0
      %806 = vmatprep.subr.mxu0 0.0
      %807 = vmatpush2.xpose.msra.mxu0 0.0
      %808 = vmatprep.subr.mxu0 0.0
      %809 = vmatpush2.xpose.msra.mxu0 0.0
      %810 = vmatprep.subr.mxu0 0.0
      %811 = vmatpush2.xpose.msra.mxu0 0.0
      %812 = vmatprep.subr.mxu0 0.0
      %813 = vmatpush2.xpose.msra.mxu0 0.0
      %814 = vmatprep.subr.mxu0 0.0
      %815 = vmatpush2.xpose.msra.mxu0 0.0
      %816 = vmatprep.subr.mxu0 0.0
      %817 = vmatpush2.xpose.msra.mxu0 0.0
      %818 = vmatprep.subr.mxu0 0.0
      %819 = vmatpush2.xpose.msra.mxu0 0.0
      %820 = vmatprep.mubr.f32.mxu0 0.0
      %821 = vmatmul.mubr.f32.gmra.mxu0 %v752
      %v822 = vpop.f32.mrf.mxu0
      %v823 = vadd.f32 0.0, %v822
      %v824 = vpop.f32.mrf.mxu0
      %825 = vdwg.mxu0
      %826 = vrot.lane.b32.xlu0 %v664, 96
      %v827 = vpop.permute.xlu0 %826
      %v828 = vsel %vm675, %v657, 0
      %v830 = vsel %vm675, %v827, 0
      %832 = vmatprep.subr.mxu0 0.0
      %833 = vmatpush1.xpose.msra.mxu0 0.0
      %834 = vmatprep.subr.mxu0 0.0
      %835 = vmatpush1.xpose.msra.mxu0 0.0
      %836 = vmatprep.subr.mxu0 0.0
      %837 = vmatpush1.xpose.msra.mxu0 0.0
      %838 = vmatprep.subr.mxu0 0.0
      %839 = vmatpush1.xpose.msra.mxu0 0.0
      %840 = vmatprep.subr.mxu0 0.0
      %841 = vmatpush1.xpose.msra.mxu0 0.0
      %842 = vmatprep.subr.mxu0 0.0
      %843 = vmatpush1.xpose.msra.mxu0 0.0
      %844 = vmatprep.subr.mxu0 0.0
      %845 = vmatpush1.xpose.msra.mxu0 0.0
      %846 = vmatprep.subr.mxu0 0.0
      %847 = vmatpush1.xpose.msra.mxu0 0.0
      %848 = vmatprep.subr.mxu0 0.0
      %849 = vmatpush1.xpose.msra.mxu0 0.0
      %850 = vmatprep.subr.mxu0 0.0
      %851 = vmatpush1.xpose.msra.mxu0 0.0
      %852 = vmatprep.subr.mxu0 0.0
      %853 = vmatpush1.xpose.msra.mxu0 0.0
      %854 = vmatprep.subr.mxu0 0.0
      %855 = vmatpush1.xpose.msra.mxu0 0.0
      %856 = vmatprep.subr.mxu0 0.0
      %857 = vmatpush1.xpose.msra.mxu0 0.0
      %858 = vmatprep.subr.mxu0 0.0
      %859 = vmatpush1.xpose.msra.mxu0 0.0
      %860 = vmatprep.subr.mxu0 0.0
      %861 = vmatpush1.xpose.msra.mxu0 0.0
      %862 = vmatprep.subr.mxu0 0.0
      %863 = vmatpush1.xpose.msra.mxu0 %v830
      %864 = vmatprep.subr.mxu0 0.0
      %865 = vmatpush2.xpose.msra.mxu0 0.0
      %866 = vmatprep.subr.mxu0 0.0
      %867 = vmatpush2.xpose.msra.mxu0 0.0
      %868 = vmatprep.subr.mxu0 0.0
      %869 = vmatpush2.xpose.msra.mxu0 0.0
      %870 = vmatprep.subr.mxu0 0.0
      %871 = vmatpush2.xpose.msra.mxu0 0.0
      %872 = vmatprep.subr.mxu0 0.0
      %873 = vmatpush2.xpose.msra.mxu0 0.0
      %874 = vmatprep.subr.mxu0 0.0
      %875 = vmatpush2.xpose.msra.mxu0 0.0
      %876 = vmatprep.subr.mxu0 0.0
      %877 = vmatpush2.xpose.msra.mxu0 0.0
      %878 = vmatprep.subr.mxu0 0.0
      %879 = vmatpush2.xpose.msra.mxu0 0.0
      %880 = vmatprep.subr.mxu0 0.0
      %881 = vmatpush2.xpose.msra.mxu0 0.0
      %882 = vmatprep.subr.mxu0 0.0
      %883 = vmatpush2.xpose.msra.mxu0 0.0
      %884 = vmatprep.subr.mxu0 0.0
      %885 = vmatpush2.xpose.msra.mxu0 0.0
      %886 = vmatprep.subr.mxu0 0.0
      %887 = vmatpush2.xpose.msra.mxu0 0.0
      %888 = vmatprep.subr.mxu0 0.0
      %889 = vmatpush2.xpose.msra.mxu0 0.0
      %890 = vmatprep.subr.mxu0 0.0
      %891 = vmatpush2.xpose.msra.mxu0 0.0
      %892 = vmatprep.subr.mxu0 0.0
      %893 = vmatpush2.xpose.msra.mxu0 0.0
      %894 = vmatprep.subr.mxu0 0.0
      %895 = vmatpush2.xpose.msra.mxu0 0.0
      %896 = vmatprep.mubr.f32.mxu0 0.0
      %897 = vmatmul.mubr.f32.gmra.mxu0 %v828
      %v898 = vpop.f32.mrf.mxu0
      %v899 = vadd.f32 0.0, %v898
      %v900 = vpop.f32.mrf.mxu0
      %901 = vdwg.mxu0
      %902 = vrot.lane.b32.xlu0 %v666, 96
      %v903 = vpop.permute.xlu0 %902
      %v904 = vsel %vm675, %v659, 0
      %v906 = vsel %vm675, %v903, 0
      %908 = vmatprep.subr.mxu0 0.0
      %909 = vmatpush1.xpose.msra.mxu0 0.0
      %910 = vmatprep.subr.mxu0 0.0
      %911 = vmatpush1.xpose.msra.mxu0 0.0
      %912 = vmatprep.subr.mxu0 0.0
      %913 = vmatpush1.xpose.msra.mxu0 0.0
      %914 = vmatprep.subr.mxu0 0.0
      %915 = vmatpush1.xpose.msra.mxu0 0.0
      %916 = vmatprep.subr.mxu0 0.0
      %917 = vmatpush1.xpose.msra.mxu0 0.0
      %918 = vmatprep.subr.mxu0 0.0
      %919 = vmatpush1.xpose.msra.mxu0 0.0
      %920 = vmatprep.subr.mxu0 0.0
      %921 = vmatpush1.xpose.msra.mxu0 0.0
      %922 = vmatprep.subr.mxu0 0.0
      %923 = vmatpush1.xpose.msra.mxu0 0.0
      %924 = vmatprep.subr.mxu0 0.0
      %925 = vmatpush1.xpose.msra.mxu0 0.0
      %926 = vmatprep.subr.mxu0 0.0
      %927 = vmatpush1.xpose.msra.mxu0 0.0
      %928 = vmatprep.subr.mxu0 0.0
      %929 = vmatpush1.xpose.msra.mxu0 0.0
      %930 = vmatprep.subr.mxu0 0.0
      %931 = vmatpush1.xpose.msra.mxu0 0.0
      %932 = vmatprep.subr.mxu0 0.0
      %933 = vmatpush1.xpose.msra.mxu0 0.0
      %934 = vmatprep.subr.mxu0 0.0
      %935 = vmatpush1.xpose.msra.mxu0 0.0
      %936 = vmatprep.subr.mxu0 0.0
      %937 = vmatpush1.xpose.msra.mxu0 0.0
      %938 = vmatprep.subr.mxu0 0.0
      %939 = vmatpush1.xpose.msra.mxu0 %v906
      %940 = vmatprep.subr.mxu0 0.0
      %941 = vmatpush2.xpose.msra.mxu0 0.0
      %942 = vmatprep.subr.mxu0 0.0
      %943 = vmatpush2.xpose.msra.mxu0 0.0
      %944 = vmatprep.subr.mxu0 0.0
      %945 = vmatpush2.xpose.msra.mxu0 0.0
      %946 = vmatprep.subr.mxu0 0.0
      %947 = vmatpush2.xpose.msra.mxu0 0.0
      %948 = vmatprep.subr.mxu0 0.0
      %949 = vmatpush2.xpose.msra.mxu0 0.0
      %950 = vmatprep.subr.mxu0 0.0
      %951 = vmatpush2.xpose.msra.mxu0 0.0
      %952 = vmatprep.subr.mxu0 0.0
      %953 = vmatpush2.xpose.msra.mxu0 0.0
      %954 = vmatprep.subr.mxu0 0.0
      %955 = vmatpush2.xpose.msra.mxu0 0.0
      %956 = vmatprep.subr.mxu0 0.0
      %957 = vmatpush2.xpose.msra.mxu0 0.0
      %958 = vmatprep.subr.mxu0 0.0
      %959 = vmatpush2.xpose.msra.mxu0 0.0
      %960 = vmatprep.subr.mxu0 0.0
      %961 = vmatpush2.xpose.msra.mxu0 0.0
      %962 = vmatprep.subr.mxu0 0.0
      %963 = vmatpush2.xpose.msra.mxu0 0.0
      %964 = vmatprep.subr.mxu0 0.0
      %965 = vmatpush2.xpose.msra.mxu0 0.0
      %966 = vmatprep.subr.mxu0 0.0
      %967 = vmatpush2.xpose.msra.mxu0 0.0
      %968 = vmatprep.subr.mxu0 0.0
      %969 = vmatpush2.xpose.msra.mxu0 0.0
      %970 = vmatprep.subr.mxu0 0.0
      %971 = vmatpush2.xpose.msra.mxu0 0.0
      %972 = vmatprep.mubr.f32.mxu0 0.0
      %973 = vmatmul.mubr.f32.gmra.mxu0 %v904
      %v974 = vpop.f32.mrf.mxu0
      %v975 = vadd.f32 0.0, %v974
      %v976 = vpop.f32.mrf.mxu0
      %977 = vdwg.mxu0
      %v978 = vsel %vm675, %v747, -inf
      %979 = vmax.xlane.f32.xlu0 %v978
      %v980 = vpop.xlane.xlu0 %979
      %v981 = vsel %vm675, %v823, -inf
      %982 = vmax.xlane.f32.xlu0 %v981
      %v983 = vpop.xlane.xlu0 %982
      %v984 = vsel %vm675, %v899, -inf
      %985 = vmax.xlane.f32.xlu0 %v984
      %v986 = vpop.xlane.xlu0 %985
      %v987 = vsel %vm675, %v975, -inf
      %988 = vmax.xlane.f32.xlu0 %v987
      %v989 = vpop.xlane.xlu0 %988
      %v990 = vsub.f32 %v747, %v980
      %v991 = vsub.f32 %v823, %v983
      %v992 = vsub.f32 %v899, %v986
      %v993 = vsub.f32 %v975, %v989
      %v994 = vmul.f32 %v990, 1.442695
      %v995 = vpow.pop %v994
      %v996 = vmul.f32 %v991, 1.442695
      %v997 = vpow.pop %v996
      %v998 = vmul.f32 %v992, 1.442695
      %v999 = vpow.pop %v998
      %v1000 = vmul.f32 %v993, 1.442695
      %v1001 = vpow.pop %v1000
      %v1002 = vsel %vm675, %v995, 0.0
      %1003 = vadd.xlane.f32.xlu0 %v1002
      %v1004 = vpop.xlane.xlu0 %1003
      %v1005 = vsel %vm675, %v997, 0.0
      %1006 = vadd.xlane.f32.xlu0 %v1005
      %v1007 = vpop.xlane.xlu0 %1006
      %v1008 = vsel %vm675, %v999, 0.0
      %1009 = vadd.xlane.f32.xlu0 %v1008
      %v1010 = vpop.xlane.xlu0 %1009
      %v1011 = vsel %vm675, %v1001, 0.0
      %1012 = vadd.xlane.f32.xlu0 %v1011
      %v1013 = vpop.xlane.xlu0 %1012
      %v1014 = vrcp.pop %v1004
      %v1015 = vrcp.pop %v1007
      %v1016 = vrcp.pop %v1010
      %v1017 = vrcp.pop %v1013
      %v1018 = vmul.f32 %v995, %v1014
      %v1019 = vmul.f32 %v997, %v1015
      %v1020 = vmul.f32 %v999, %v1016
      %v1021 = vmul.f32 %v1001, %v1017
      %1022 = vrot.lane.b32.xlu0 %v603, 64
      %v1023 = vpop.permute.xlu0 %1022
      %v1026 = vsel %vm675, %v1018, 0
      %1028 = vmatprep.subr.mxu0 0.0
      %1029 = vmatpush1.msra.mxu0 0.0
      %1030 = vmatprep.subr.mxu0 0.0
      %1031 = vmatpush1.msra.mxu0 0.0
      %1032 = vmatprep.subr.mxu0 0.0
      %1033 = vmatpush1.msra.mxu0 0.0
      %1034 = vmatprep.subr.mxu0 0.0
      %1035 = vmatpush1.msra.mxu0 0.0
      %1036 = vmatprep.subr.mxu0 0.0
      %1037 = vmatpush1.msra.mxu0 0.0
      %1038 = vmatprep.subr.mxu0 0.0
      %1039 = vmatpush1.msra.mxu0 0.0
      %1040 = vmatprep.subr.mxu0 0.0
      %1041 = vmatpush1.msra.mxu0 0.0
      %1042 = vmatprep.subr.mxu0 0.0
      %1043 = vmatpush1.msra.mxu0 0.0
      %1044 = vmatprep.subr.mxu0 0.0
      %1045 = vmatpush1.msra.mxu0 0.0
      %1046 = vmatprep.subr.mxu0 0.0
      %1047 = vmatpush1.msra.mxu0 0.0
      %1048 = vmatprep.subr.mxu0 0.0
      %1049 = vmatpush1.msra.mxu0 0.0
      %1050 = vmatprep.subr.mxu0 0.0
      %1051 = vmatpush1.msra.mxu0 0.0
      %1052 = vmatprep.subr.mxu0 0.0
      %1053 = vmatpush1.msra.mxu0 0.0
      %1054 = vmatprep.subr.mxu0 0.0
      %1055 = vmatpush1.msra.mxu0 0.0
      %1056 = vmatprep.subr.mxu0 0.0
      %1057 = vmatpush1.msra.mxu0 0.0
      %1058 = vmatprep.subr.mxu0 0.0
      %1059 = vmatpush1.msra.mxu0 %v1023
      %1060 = vmatprep.subr.mxu0 0.0
      %1061 = vmatpush2.msra.mxu0 0.0
      %1062 = vmatprep.subr.mxu0 0.0
      %1063 = vmatpush2.msra.mxu0 0.0
      %1064 = vmatprep.subr.mxu0 0.0
      %1065 = vmatpush2.msra.mxu0 0.0
      %1066 = vmatprep.subr.mxu0 0.0
      %1067 = vmatpush2.msra.mxu0 0.0
      %1068 = vmatprep.subr.mxu0 0.0
      %1069 = vmatpush2.msra.mxu0 0.0
      %1070 = vmatprep.subr.mxu0 0.0
      %1071 = vmatpush2.msra.mxu0 0.0
      %1072 = vmatprep.subr.mxu0 0.0
      %1073 = vmatpush2.msra.mxu0 0.0
      %1074 = vmatprep.subr.mxu0 0.0
      %1075 = vmatpush2.msra.mxu0 0.0
      %1076 = vmatprep.subr.mxu0 0.0
      %1077 = vmatpush2.msra.mxu0 0.0
      %1078 = vmatprep.subr.mxu0 0.0
      %1079 = vmatpush2.msra.mxu0 0.0
      %1080 = vmatprep.subr.mxu0 0.0
      %1081 = vmatpush2.msra.mxu0 0.0
      %1082 = vmatprep.subr.mxu0 0.0
      %1083 = vmatpush2.msra.mxu0 0.0
      %1084 = vmatprep.subr.mxu0 0.0
      %1085 = vmatpush2.msra.mxu0 0.0
      %1086 = vmatprep.subr.mxu0 0.0
      %1087 = vmatpush2.msra.mxu0 0.0
      %1088 = vmatprep.subr.mxu0 0.0
      %1089 = vmatpush2.msra.mxu0 0.0
      %1090 = vmatprep.subr.mxu0 0.0
      %1091 = vmatpush2.msra.mxu0 0.0
      %1092 = vmatprep.mubr.f32.mxu0 0.0
      %1093 = vmatmul.mubr.f32.gmra.mxu0 %v1026
      %v1094 = vpop.f32.mrf.mxu0
      %v1095 = vadd.f32 0.0, %v1094
      %v1096 = vpop.f32.mrf.mxu0
      %1097 = vdwg.mxu0
      %1098 = vrot.lane.b32.xlu0 %v668, 64
      %v1099 = vpop.permute.xlu0 %1098
      %v1102 = vsel %vm675, %v1019, 0
      %1104 = vmatprep.subr.mxu0 0.0
      %1105 = vmatpush1.msra.mxu0 0.0
      %1106 = vmatprep.subr.mxu0 0.0
      %1107 = vmatpush1.msra.mxu0 0.0
      %1108 = vmatprep.subr.mxu0 0.0
      %1109 = vmatpush1.msra.mxu0 0.0
      %1110 = vmatprep.subr.mxu0 0.0
      %1111 = vmatpush1.msra.mxu0 0.0
      %1112 = vmatprep.subr.mxu0 0.0
      %1113 = vmatpush1.msra.mxu0 0.0
      %1114 = vmatprep.subr.mxu0 0.0
      %1115 = vmatpush1.msra.mxu0 0.0
      %1116 = vmatprep.subr.mxu0 0.0
      %1117 = vmatpush1.msra.mxu0 0.0
      %1118 = vmatprep.subr.mxu0 0.0
      %1119 = vmatpush1.msra.mxu0 0.0
      %1120 = vmatprep.subr.mxu0 0.0
      %1121 = vmatpush1.msra.mxu0 0.0
      %1122 = vmatprep.subr.mxu0 0.0
      %1123 = vmatpush1.msra.mxu0 0.0
      %1124 = vmatprep.subr.mxu0 0.0
      %1125 = vmatpush1.msra.mxu0 0.0
      %1126 = vmatprep.subr.mxu0 0.0
      %1127 = vmatpush1.msra.mxu0 0.0
      %1128 = vmatprep.subr.mxu0 0.0
      %1129 = vmatpush1.msra.mxu0 0.0
      %1130 = vmatprep.subr.mxu0 0.0
      %1131 = vmatpush1.msra.mxu0 0.0
      %1132 = vmatprep.subr.mxu0 0.0
      %1133 = vmatpush1.msra.mxu0 0.0
      %1134 = vmatprep.subr.mxu0 0.0
      %1135 = vmatpush1.msra.mxu0 %v1099
      %1136 = vmatprep.subr.mxu0 0.0
      %1137 = vmatpush2.msra.mxu0 0.0
      %1138 = vmatprep.subr.mxu0 0.0
      %1139 = vmatpush2.msra.mxu0 0.0
      %1140 = vmatprep.subr.mxu0 0.0
      %1141 = vmatpush2.msra.mxu0 0.0
      %1142 = vmatprep.subr.mxu0 0.0
      %1143 = vmatpush2.msra.mxu0 0.0
      %1144 = vmatprep.subr.mxu0 0.0
      %1145 = vmatpush2.msra.mxu0 0.0
      %1146 = vmatprep.subr.mxu0 0.0
      %1147 = vmatpush2.msra.mxu0 0.0
      %1148 = vmatprep.subr.mxu0 0.0
      %1149 = vmatpush2.msra.mxu0 0.0
      %1150 = vmatprep.subr.mxu0 0.0
      %1151 = vmatpush2.msra.mxu0 0.0
      %1152 = vmatprep.subr.mxu0 0.0
      %1153 = vmatpush2.msra.mxu0 0.0
      %1154 = vmatprep.subr.mxu0 0.0
      %1155 = vmatpush2.msra.mxu0 0.0
      %1156 = vmatprep.subr.mxu0 0.0
      %1157 = vmatpush2.msra.mxu0 0.0
      %1158 = vmatprep.subr.mxu0 0.0
      %1159 = vmatpush2.msra.mxu0 0.0
      %1160 = vmatprep.subr.mxu0 0.0
      %1161 = vmatpush2.msra.mxu0 0.0
      %1162 = vmatprep.subr.mxu0 0.0
      %1163 = vmatpush2.msra.mxu0 0.0
      %1164 = vmatprep.subr.mxu0 0.0
      %1165 = vmatpush2.msra.mxu0 0.0
      %1166 = vmatprep.subr.mxu0 0.0
      %1167 = vmatpush2.msra.mxu0 0.0
      %1168 = vmatprep.mubr.f32.mxu0 0.0
      %1169 = vmatmul.mubr.f32.gmra.mxu0 %v1102
      %v1170 = vpop.f32.mrf.mxu0
      %v1171 = vadd.f32 0.0, %v1170
      %v1172 = vpop.f32.mrf.mxu0
      %1173 = vdwg.mxu0
      %1174 = vrot.lane.b32.xlu0 %v670, 64
      %v1175 = vpop.permute.xlu0 %1174
      %v1178 = vsel %vm675, %v1020, 0
      %1180 = vmatprep.subr.mxu0 0.0
      %1181 = vmatpush1.msra.mxu0 0.0
      %1182 = vmatprep.subr.mxu0 0.0
      %1183 = vmatpush1.msra.mxu0 0.0
      %1184 = vmatprep.subr.mxu0 0.0
      %1185 = vmatpush1.msra.mxu0 0.0
      %1186 = vmatprep.subr.mxu0 0.0
      %1187 = vmatpush1.msra.mxu0 0.0
      %1188 = vmatprep.subr.mxu0 0.0
      %1189 = vmatpush1.msra.mxu0 0.0
      %1190 = vmatprep.subr.mxu0 0.0
      %1191 = vmatpush1.msra.mxu0 0.0
      %1192 = vmatprep.subr.mxu0 0.0
      %1193 = vmatpush1.msra.mxu0 0.0
      %1194 = vmatprep.subr.mxu0 0.0
      %1195 = vmatpush1.msra.mxu0 0.0
      %1196 = vmatprep.subr.mxu0 0.0
      %1197 = vmatpush1.msra.mxu0 0.0
      %1198 = vmatprep.subr.mxu0 0.0
      %1199 = vmatpush1.msra.mxu0 0.0
      %1200 = vmatprep.subr.mxu0 0.0
      %1201 = vmatpush1.msra.mxu0 0.0
      %1202 = vmatprep.subr.mxu0 0.0
      %1203 = vmatpush1.msra.mxu0 0.0
      %1204 = vmatprep.subr.mxu0 0.0
      %1205 = vmatpush1.msra.mxu0 0.0
      %1206 = vmatprep.subr.mxu0 0.0
      %1207 = vmatpush1.msra.mxu0 0.0
      %1208 = vmatprep.subr.mxu0 0.0
      %1209 = vmatpush1.msra.mxu0 0.0
      %1210 = vmatprep.subr.mxu0 0.0
      %1211 = vmatpush1.msra.mxu0 %v1175
      %1212 = vmatprep.subr.mxu0 0.0
      %1213 = vmatpush2.msra.mxu0 0.0
      %1214 = vmatprep.subr.mxu0 0.0
      %1215 = vmatpush2.msra.mxu0 0.0
      %1216 = vmatprep.subr.mxu0 0.0
      %1217 = vmatpush2.msra.mxu0 0.0
      %1218 = vmatprep.subr.mxu0 0.0
      %1219 = vmatpush2.msra.mxu0 0.0
      %1220 = vmatprep.subr.mxu0 0.0
      %1221 = vmatpush2.msra.mxu0 0.0
      %1222 = vmatprep.subr.mxu0 0.0
      %1223 = vmatpush2.msra.mxu0 0.0
      %1224 = vmatprep.subr.mxu0 0.0
      %1225 = vmatpush2.msra.mxu0 0.0
      %1226 = vmatprep.subr.mxu0 0.0
      %1227 = vmatpush2.msra.mxu0 0.0
      %1228 = vmatprep.subr.mxu0 0.0
      %1229 = vmatpush2.msra.mxu0 0.0
      %1230 = vmatprep.subr.mxu0 0.0
      %1231 = vmatpush2.msra.mxu0 0.0
      %1232 = vmatprep.subr.mxu0 0.0
      %1233 = vmatpush2.msra.mxu0 0.0
      %1234 = vmatprep.subr.mxu0 0.0
      %1235 = vmatpush2.msra.mxu0 0.0
      %1236 = vmatprep.subr.mxu0 0.0
      %1237 = vmatpush2.msra.mxu0 0.0
      %1238 = vmatprep.subr.mxu0 0.0
      %1239 = vmatpush2.msra.mxu0 0.0
      %1240 = vmatprep.subr.mxu0 0.0
      %1241 = vmatpush2.msra.mxu0 0.0
      %1242 = vmatprep.subr.mxu0 0.0
      %1243 = vmatpush2.msra.mxu0 0.0
      %1244 = vmatprep.mubr.f32.mxu0 0.0
      %1245 = vmatmul.mubr.f32.gmra.mxu0 %v1178
      %v1246 = vpop.f32.mrf.mxu0
      %v1247 = vadd.f32 0.0, %v1246
      %v1248 = vpop.f32.mrf.mxu0
      %1249 = vdwg.mxu0
      %1250 = vrot.lane.b32.xlu0 %v672, 64
      %v1251 = vpop.permute.xlu0 %1250
      %v1254 = vsel %vm675, %v1021, 0
      %1256 = vmatprep.subr.mxu0 0.0
      %1257 = vmatpush1.msra.mxu0 0.0
      %1258 = vmatprep.subr.mxu0 0.0
      %1259 = vmatpush1.msra.mxu0 0.0
      %1260 = vmatprep.subr.mxu0 0.0
      %1261 = vmatpush1.msra.mxu0 0.0
      %1262 = vmatprep.subr.mxu0 0.0
      %1263 = vmatpush1.msra.mxu0 0.0
      %1264 = vmatprep.subr.mxu0 0.0
      %1265 = vmatpush1.msra.mxu0 0.0
      %1266 = vmatprep.subr.mxu0 0.0
      %1267 = vmatpush1.msra.mxu0 0.0
      %1268 = vmatprep.subr.mxu0 0.0
      %1269 = vmatpush1.msra.mxu0 0.0
      %1270 = vmatprep.subr.mxu0 0.0
      %1271 = vmatpush1.msra.mxu0 0.0
      %1272 = vmatprep.subr.mxu0 0.0
      %1273 = vmatpush1.msra.mxu0 0.0
      %1274 = vmatprep.subr.mxu0 0.0
      %1275 = vmatpush1.msra.mxu0 0.0
      %1276 = vmatprep.subr.mxu0 0.0
      %1277 = vmatpush1.msra.mxu0 0.0
      %1278 = vmatprep.subr.mxu0 0.0
      %1279 = vmatpush1.msra.mxu0 0.0
      %1280 = vmatprep.subr.mxu0 0.0
      %1281 = vmatpush1.msra.mxu0 0.0
      %1282 = vmatprep.subr.mxu0 0.0
      %1283 = vmatpush1.msra.mxu0 0.0
      %1284 = vmatprep.subr.mxu0 0.0
      %1285 = vmatpush1.msra.mxu0 0.0
      %1286 = vmatprep.subr.mxu0 0.0
      %1287 = vmatpush1.msra.mxu0 %v1251
      %1288 = vmatprep.subr.mxu0 0.0
      %1289 = vmatpush2.msra.mxu0 0.0
      %1290 = vmatprep.subr.mxu0 0.0
      %1291 = vmatpush2.msra.mxu0 0.0
      %1292 = vmatprep.subr.mxu0 0.0
      %1293 = vmatpush2.msra.mxu0 0.0
      %1294 = vmatprep.subr.mxu0 0.0
      %1295 = vmatpush2.msra.mxu0 0.0
      %1296 = vmatprep.subr.mxu0 0.0
      %1297 = vmatpush2.msra.mxu0 0.0
      %1298 = vmatprep.subr.mxu0 0.0
      %1299 = vmatpush2.msra.mxu0 0.0
      %1300 = vmatprep.subr.mxu0 0.0
      %1301 = vmatpush2.msra.mxu0 0.0
      %1302 = vmatprep.subr.mxu0 0.0
      %1303 = vmatpush2.msra.mxu0 0.0
      %1304 = vmatprep.subr.mxu0 0.0
      %1305 = vmatpush2.msra.mxu0 0.0
      %1306 = vmatprep.subr.mxu0 0.0
      %1307 = vmatpush2.msra.mxu0 0.0
      %1308 = vmatprep.subr.mxu0 0.0
      %1309 = vmatpush2.msra.mxu0 0.0
      %1310 = vmatprep.subr.mxu0 0.0
      %1311 = vmatpush2.msra.mxu0 0.0
      %1312 = vmatprep.subr.mxu0 0.0
      %1313 = vmatpush2.msra.mxu0 0.0
      %1314 = vmatprep.subr.mxu0 0.0
      %1315 = vmatpush2.msra.mxu0 0.0
      %1316 = vmatprep.subr.mxu0 0.0
      %1317 = vmatpush2.msra.mxu0 0.0
      %1318 = vmatprep.subr.mxu0 0.0
      %1319 = vmatpush2.msra.mxu0 0.0
      %1320 = vmatprep.mubr.f32.mxu0 0.0
      %1321 = vmatmul.mubr.f32.gmra.mxu0 %v1254
      %v1322 = vpop.f32.mrf.mxu0
      %v1323 = vadd.f32 0.0, %v1322
      %v1324 = vpop.f32.mrf.mxu0
      %1325 = vdwg.mxu0
      %v1326 = vld [vmem:[%s6] sm:$0xff]
      %v1327 = vld [vmem:[%s6 + $0x8] sm:$0xff]
      %v1328 = vld [vmem:[%s6 + $0x10] sm:$0xff]
      %v1329 = vld [vmem:[%s6 + $0x18] sm:$0xff]
      %v1331 = vsel %vm675, %v1095, 0
      %1333 = vmatprep.subr.mxu0 0.0
      %1334 = vmatpush1.msra.mxu0 0.0
      %1335 = vmatprep.subr.mxu0 0.0
      %1336 = vmatpush1.msra.mxu0 0.0
      %1337 = vmatprep.subr.mxu0 0.0
      %1338 = vmatpush1.msra.mxu0 0.0
      %1339 = vmatprep.subr.mxu0 0.0
      %1340 = vmatpush1.msra.mxu0 0.0
      %1341 = vmatprep.subr.mxu0 0.0
      %1342 = vmatpush1.msra.mxu0 0.0
      %1343 = vmatprep.subr.mxu0 0.0
      %1344 = vmatpush1.msra.mxu0 0.0
      %1345 = vmatprep.subr.mxu0 0.0
      %1346 = vmatpush1.msra.mxu0 0.0
      %1347 = vmatprep.subr.mxu0 0.0
      %1348 = vmatpush1.msra.mxu0 0.0
      %1349 = vmatprep.subr.mxu0 0.0
      %1350 = vmatpush1.msra.mxu0 0.0
      %1351 = vmatprep.subr.mxu0 0.0
      %1352 = vmatpush1.msra.mxu0 0.0
      %1353 = vmatprep.subr.mxu0 0.0
      %1354 = vmatpush1.msra.mxu0 0.0
      %1355 = vmatprep.subr.mxu0 0.0
      %1356 = vmatpush1.msra.mxu0 0.0
      %1357 = vmatprep.subr.mxu0 0.0
      %1358 = vmatpush1.msra.mxu0 0.0
      %1359 = vmatprep.subr.mxu0 0.0
      %1360 = vmatpush1.msra.mxu0 0.0
      %1361 = vmatprep.subr.mxu0 0.0
      %1362 = vmatpush1.msra.mxu0 0.0
      %1363 = vmatprep.subr.mxu0 0.0
      %1364 = vmatpush1.msra.mxu0 %v1326
      %1365 = vmatprep.subr.mxu0 0.0
      %1366 = vmatpush2.msra.mxu0 0.0
      %1367 = vmatprep.subr.mxu0 0.0
      %1368 = vmatpush2.msra.mxu0 0.0
      %1369 = vmatprep.subr.mxu0 0.0
      %1370 = vmatpush2.msra.mxu0 0.0
      %1371 = vmatprep.subr.mxu0 0.0
      %1372 = vmatpush2.msra.mxu0 0.0
      %1373 = vmatprep.subr.mxu0 0.0
      %1374 = vmatpush2.msra.mxu0 0.0
      %1375 = vmatprep.subr.mxu0 0.0
      %1376 = vmatpush2.msra.mxu0 0.0
      %1377 = vmatprep.subr.mxu0 0.0
      %1378 = vmatpush2.msra.mxu0 0.0
      %1379 = vmatprep.subr.mxu0 0.0
      %1380 = vmatpush2.msra.mxu0 0.0
      %1381 = vmatprep.subr.mxu0 0.0
      %1382 = vmatpush2.msra.mxu0 0.0
      %1383 = vmatprep.subr.mxu0 0.0
      %1384 = vmatpush2.msra.mxu0 0.0
      %1385 = vmatprep.subr.mxu0 0.0
      %1386 = vmatpush2.msra.mxu0 0.0
      %1387 = vmatprep.subr.mxu0 0.0
      %1388 = vmatpush2.msra.mxu0 0.0
      %1389 = vmatprep.subr.mxu0 0.0
      %1390 = vmatpush2.msra.mxu0 0.0
      %1391 = vmatprep.subr.mxu0 0.0
      %1392 = vmatpush2.msra.mxu0 0.0
      %1393 = vmatprep.subr.mxu0 0.0
      %1394 = vmatpush2.msra.mxu0 0.0
      %1395 = vmatprep.subr.mxu0 0.0
      %1396 = vmatpush2.msra.mxu0 0.0
      %1397 = vmatprep.mubr.f32.mxu0 0.0
      %1398 = vmatmul.mubr.f32.gmra.mxu0 %v1331
      %v1399 = vpop.f32.mrf.mxu0
      %v1400 = vadd.f32 0.0, %v1399
      %v1401 = vpop.f32.mrf.mxu0
      %1402 = vdwg.mxu0
      %v1404 = vsel %vm675, %v1171, 0
      %1406 = vmatprep.subr.mxu0 0.0
      %1407 = vmatpush1.msra.mxu0 0.0
      %1408 = vmatprep.subr.mxu0 0.0
      %1409 = vmatpush1.msra.mxu0 0.0
      %1410 = vmatprep.subr.mxu0 0.0
      %1411 = vmatpush1.msra.mxu0 0.0
      %1412 = vmatprep.subr.mxu0 0.0
      %1413 = vmatpush1.msra.mxu0 0.0
      %1414 = vmatprep.subr.mxu0 0.0
      %1415 = vmatpush1.msra.mxu0 0.0
      %1416 = vmatprep.subr.mxu0 0.0
      %1417 = vmatpush1.msra.mxu0 0.0
      %1418 = vmatprep.subr.mxu0 0.0
      %1419 = vmatpush1.msra.mxu0 0.0
      %1420 = vmatprep.subr.mxu0 0.0
      %1421 = vmatpush1.msra.mxu0 0.0
      %1422 = vmatprep.subr.mxu0 0.0
      %1423 = vmatpush1.msra.mxu0 0.0
      %1424 = vmatprep.subr.mxu0 0.0
      %1425 = vmatpush1.msra.mxu0 0.0
      %1426 = vmatprep.subr.mxu0 0.0
      %1427 = vmatpush1.msra.mxu0 0.0
      %1428 = vmatprep.subr.mxu0 0.0
      %1429 = vmatpush1.msra.mxu0 0.0
      %1430 = vmatprep.subr.mxu0 0.0
      %1431 = vmatpush1.msra.mxu0 0.0
      %1432 = vmatprep.subr.mxu0 0.0
      %1433 = vmatpush1.msra.mxu0 0.0
      %1434 = vmatprep.subr.mxu0 0.0
      %1435 = vmatpush1.msra.mxu0 0.0
      %1436 = vmatprep.subr.mxu0 0.0
      %1437 = vmatpush1.msra.mxu0 %v1327
      %1438 = vmatprep.subr.mxu0 0.0
      %1439 = vmatpush2.msra.mxu0 0.0
      %1440 = vmatprep.subr.mxu0 0.0
      %1441 = vmatpush2.msra.mxu0 0.0
      %1442 = vmatprep.subr.mxu0 0.0
      %1443 = vmatpush2.msra.mxu0 0.0
      %1444 = vmatprep.subr.mxu0 0.0
      %1445 = vmatpush2.msra.mxu0 0.0
      %1446 = vmatprep.subr.mxu0 0.0
      %1447 = vmatpush2.msra.mxu0 0.0
      %1448 = vmatprep.subr.mxu0 0.0
      %1449 = vmatpush2.msra.mxu0 0.0
      %1450 = vmatprep.subr.mxu0 0.0
      %1451 = vmatpush2.msra.mxu0 0.0
      %1452 = vmatprep.subr.mxu0 0.0
      %1453 = vmatpush2.msra.mxu0 0.0
      %1454 = vmatprep.subr.mxu0 0.0
      %1455 = vmatpush2.msra.mxu0 0.0
      %1456 = vmatprep.subr.mxu0 0.0
      %1457 = vmatpush2.msra.mxu0 0.0
      %1458 = vmatprep.subr.mxu0 0.0
      %1459 = vmatpush2.msra.mxu0 0.0
      %1460 = vmatprep.subr.mxu0 0.0
      %1461 = vmatpush2.msra.mxu0 0.0
      %1462 = vmatprep.subr.mxu0 0.0
      %1463 = vmatpush2.msra.mxu0 0.0
      %1464 = vmatprep.subr.mxu0 0.0
      %1465 = vmatpush2.msra.mxu0 0.0
      %1466 = vmatprep.subr.mxu0 0.0
      %1467 = vmatpush2.msra.mxu0 0.0
      %1468 = vmatprep.subr.mxu0 0.0
      %1469 = vmatpush2.msra.mxu0 0.0
      %1470 = vmatprep.mubr.f32.mxu0 0.0
      %1471 = vmatmul.mubr.f32.gmra.mxu0 %v1404
      %v1472 = vpop.f32.mrf.mxu0
      %v1473 = vadd.f32 0.0, %v1472
      %v1474 = vpop.f32.mrf.mxu0
      %1475 = vdwg.mxu0
      %v1477 = vsel %vm675, %v1247, 0
      %1479 = vmatprep.subr.mxu0 0.0
      %1480 = vmatpush1.msra.mxu0 0.0
      %1481 = vmatprep.subr.mxu0 0.0
      %1482 = vmatpush1.msra.mxu0 0.0
      %1483 = vmatprep.subr.mxu0 0.0
      %1484 = vmatpush1.msra.mxu0 0.0
      %1485 = vmatprep.subr.mxu0 0.0
      %1486 = vmatpush1.msra.mxu0 0.0
      %1487 = vmatprep.subr.mxu0 0.0
      %1488 = vmatpush1.msra.mxu0 0.0
      %1489 = vmatprep.subr.mxu0 0.0
      %1490 = vmatpush1.msra.mxu0 0.0
      %1491 = vmatprep.subr.mxu0 0.0
      %1492 = vmatpush1.msra.mxu0 0.0
      %1493 = vmatprep.subr.mxu0 0.0
      %1494 = vmatpush1.msra.mxu0 0.0
      %1495 = vmatprep.subr.mxu0 0.0
      %1496 = vmatpush1.msra.mxu0 0.0
      %1497 = vmatprep.subr.mxu0 0.0
      %1498 = vmatpush1.msra.mxu0 0.0
      %1499 = vmatprep.subr.mxu0 0.0
      %1500 = vmatpush1.msra.mxu0 0.0
      %1501 = vmatprep.subr.mxu0 0.0
      %1502 = vmatpush1.msra.mxu0 0.0
      %1503 = vmatprep.subr.mxu0 0.0
      %1504 = vmatpush1.msra.mxu0 0.0
      %1505 = vmatprep.subr.mxu0 0.0
      %1506 = vmatpush1.msra.mxu0 0.0
      %1507 = vmatprep.subr.mxu0 0.0
      %1508 = vmatpush1.msra.mxu0 0.0
      %1509 = vmatprep.subr.mxu0 0.0
      %1510 = vmatpush1.msra.mxu0 %v1328
      %1511 = vmatprep.subr.mxu0 0.0
      %1512 = vmatpush2.msra.mxu0 0.0
      %1513 = vmatprep.subr.mxu0 0.0
      %1514 = vmatpush2.msra.mxu0 0.0
      %1515 = vmatprep.subr.mxu0 0.0
      %1516 = vmatpush2.msra.mxu0 0.0
      %1517 = vmatprep.subr.mxu0 0.0
      %1518 = vmatpush2.msra.mxu0 0.0
      %1519 = vmatprep.subr.mxu0 0.0
      %1520 = vmatpush2.msra.mxu0 0.0
      %1521 = vmatprep.subr.mxu0 0.0
      %1522 = vmatpush2.msra.mxu0 0.0
      %1523 = vmatprep.subr.mxu0 0.0
      %1524 = vmatpush2.msra.mxu0 0.0
      %1525 = vmatprep.subr.mxu0 0.0
      %1526 = vmatpush2.msra.mxu0 0.0
      %1527 = vmatprep.subr.mxu0 0.0
      %1528 = vmatpush2.msra.mxu0 0.0
      %1529 = vmatprep.subr.mxu0 0.0
      %1530 = vmatpush2.msra.mxu0 0.0
      %1531 = vmatprep.subr.mxu0 0.0
      %1532 = vmatpush2.msra.mxu0 0.0
      %1533 = vmatprep.subr.mxu0 0.0
      %1534 = vmatpush2.msra.mxu0 0.0
      %1535 = vmatprep.subr.mxu0 0.0
      %1536 = vmatpush2.msra.mxu0 0.0
      %1537 = vmatprep.subr.mxu0 0.0
      %1538 = vmatpush2.msra.mxu0 0.0
      %1539 = vmatprep.subr.mxu0 0.0
      %1540 = vmatpush2.msra.mxu0 0.0
      %1541 = vmatprep.subr.mxu0 0.0
      %1542 = vmatpush2.msra.mxu0 0.0
      %1543 = vmatprep.mubr.f32.mxu0 0.0
      %1544 = vmatmul.mubr.f32.gmra.mxu0 %v1477
      %v1545 = vpop.f32.mrf.mxu0
      %v1546 = vadd.f32 0.0, %v1545
      %v1547 = vpop.f32.mrf.mxu0
      %1548 = vdwg.mxu0
      %v1550 = vsel %vm675, %v1323, 0
      %1552 = vmatprep.subr.mxu0 0.0
      %1553 = vmatpush1.msra.mxu0 0.0
      %1554 = vmatprep.subr.mxu0 0.0
      %1555 = vmatpush1.msra.mxu0 0.0
      %1556 = vmatprep.subr.mxu0 0.0
      %1557 = vmatpush1.msra.mxu0 0.0
      %1558 = vmatprep.subr.mxu0 0.0
      %1559 = vmatpush1.msra.mxu0 0.0
      %1560 = vmatprep.subr.mxu0 0.0
      %1561 = vmatpush1.msra.mxu0 0.0
      %1562 = vmatprep.subr.mxu0 0.0
      %1563 = vmatpush1.msra.mxu0 0.0
      %1564 = vmatprep.subr.mxu0 0.0
      %1565 = vmatpush1.msra.mxu0 0.0
      %1566 = vmatprep.subr.mxu0 0.0
      %1567 = vmatpush1.msra.mxu0 0.0
      %1568 = vmatprep.subr.mxu0 0.0
      %1569 = vmatpush1.msra.mxu0 0.0
      %1570 = vmatprep.subr.mxu0 0.0
      %1571 = vmatpush1.msra.mxu0 0.0
      %1572 = vmatprep.subr.mxu0 0.0
      %1573 = vmatpush1.msra.mxu0 0.0
      %1574 = vmatprep.subr.mxu0 0.0
      %1575 = vmatpush1.msra.mxu0 0.0
      %1576 = vmatprep.subr.mxu0 0.0
      %1577 = vmatpush1.msra.mxu0 0.0
      %1578 = vmatprep.subr.mxu0 0.0
      %1579 = vmatpush1.msra.mxu0 0.0
      %1580 = vmatprep.subr.mxu0 0.0
      %1581 = vmatpush1.msra.mxu0 0.0
      %1582 = vmatprep.subr.mxu0 0.0
      %1583 = vmatpush1.msra.mxu0 %v1329
      %1584 = vmatprep.subr.mxu0 0.0
      %1585 = vmatpush2.msra.mxu0 0.0
      %1586 = vmatprep.subr.mxu0 0.0
      %1587 = vmatpush2.msra.mxu0 0.0
      %1588 = vmatprep.subr.mxu0 0.0
      %1589 = vmatpush2.msra.mxu0 0.0
      %1590 = vmatprep.subr.mxu0 0.0
      %1591 = vmatpush2.msra.mxu0 0.0
      %1592 = vmatprep.subr.mxu0 0.0
      %1593 = vmatpush2.msra.mxu0 0.0
      %1594 = vmatprep.subr.mxu0 0.0
      %1595 = vmatpush2.msra.mxu0 0.0
      %1596 = vmatprep.subr.mxu0 0.0
      %1597 = vmatpush2.msra.mxu0 0.0
      %1598 = vmatprep.subr.mxu0 0.0
      %1599 = vmatpush2.msra.mxu0 0.0
      %1600 = vmatprep.subr.mxu0 0.0
      %1601 = vmatpush2.msra.mxu0 0.0
      %1602 = vmatprep.subr.mxu0 0.0
      %1603 = vmatpush2.msra.mxu0 0.0
      %1604 = vmatprep.subr.mxu0 0.0
      %1605 = vmatpush2.msra.mxu0 0.0
      %1606 = vmatprep.subr.mxu0 0.0
      %1607 = vmatpush2.msra.mxu0 0.0
      %1608 = vmatprep.subr.mxu0 0.0
      %1609 = vmatpush2.msra.mxu0 0.0
      %1610 = vmatprep.subr.mxu0 0.0
      %1611 = vmatpush2.msra.mxu0 0.0
      %1612 = vmatprep.subr.mxu0 0.0
      %1613 = vmatpush2.msra.mxu0 0.0
      %1614 = vmatprep.subr.mxu0 0.0
      %1615 = vmatpush2.msra.mxu0 0.0
      %1616 = vmatprep.mubr.f32.mxu0 0.0
      %1617 = vmatmul.mubr.f32.gmra.mxu0 %v1550
      %v1618 = vpop.f32.mrf.mxu0
      %v1619 = vadd.f32 0.0, %v1618
      %v1620 = vpop.f32.mrf.mxu0
      %1621 = vdwg.mxu0
      %v1622 = vsel %vm532, %v1400, 0.0
      %v1623 = vsel %vm532, %v1473, 0.0
      %v1624 = vadd.f32 %v1622, %v1623
      %v1625 = vsel %vm532, %v1546, 0.0
      %v1626 = vadd.f32 %v1624, %v1625
      %v1627 = vsel %vm532, %v1619, 0.0
      %v1628 = vadd.f32 %v1626, %v1627
      %v1629 = vld [vmem:[%s7] sm:$0x1]
      %v1631 = vlaneseq
      %v1632 = vshrl.u32 %v1631, 7
      %v1633 = vsub.s32 0, %v1632
      %v1634 = vrot.slane %v1629, %v1633
      %v1636 = vadd.f32 %v1628, %v1634
      %v1637 = vadd.f32 %v517, %v1636
      %v1638 = vld [vmem:[%s12] sm:$0x1]
      %v1639 = vld [vmem:[%s13] sm:$0x1]
      %v1640 = vsel %vm532, %v1637, 0.0
      %1641 = vadd.xlane.f32.xlu0 %v1640
      %v1642 = vpop.xlane.xlu0 %1641
      %v1643 = vrcp.pop 32.0
      %v1644 = vmul.f32 %v1642, %v1643
      %v1645 = vsub.f32 %v1637, %v1644
      %v1646 = vmul.f32 %v1645, %v1645
      %v1647 = vsel %vm532, %v1646, 0.0
      %1648 = vadd.xlane.f32.xlu0 %v1647
      %v1649 = vpop.xlane.xlu0 %1648
      %v1650 = vmul.f32 %v1649, %v1643
      %v1651 = vadd.f32 %v1650, 1e-05
      %v1652 = vrsqrt.pop %v1651
      %v1653 = vmul.f32 %v1645, %v1652
      %v1655 = vlaneseq
      %v1656 = vshrl.u32 %v1655, 7
      %v1657 = vsub.s32 0, %v1656
      %v1658 = vrot.slane %v1638, %v1657
      %v1660 = vmul.f32 %v1653, %v1658
      %v1662 = vlaneseq
      %v1663 = vshrl.u32 %v1662, 7
      %v1664 = vsub.s32 0, %v1663
      %v1665 = vrot.slane %v1639, %v1664
      %v1667 = vadd.f32 %v1660, %v1665
      %v1668 = vld [vmem:[%s8] sm:$0xff]
      %v1669 = vld [vmem:[%s8 + $0x8] sm:$0xff]
      %v1670 = vld [vmem:[%s8 + $0x10] sm:$0xff]
      %v1671 = vld [vmem:[%s8 + $0x18] sm:$0xff]
      %v1672 = vld [vmem:[%s9] sm:$0x1]
      %v1674 = vlaneseq
      %v1675 = vshrl.u32 %v1674, 7
      %v1676 = vsub.s32 0, %v1675
      %v1677 = vrot.slane %v1672, %v1676
      %v1680 = vsel %vm532, %v1667, 0
      %1682 = vmatprep.subr.mxu0 0.0
      %1683 = vmatpush1.msra.mxu0 0.0
      %1684 = vmatprep.subr.mxu0 0.0
      %1685 = vmatpush1.msra.mxu0 0.0
      %1686 = vmatprep.subr.mxu0 0.0
      %1687 = vmatpush1.msra.mxu0 0.0
      %1688 = vmatprep.subr.mxu0 0.0
      %1689 = vmatpush1.msra.mxu0 0.0
      %1690 = vmatprep.subr.mxu0 0.0
      %1691 = vmatpush1.msra.mxu0 0.0
      %1692 = vmatprep.subr.mxu0 0.0
      %1693 = vmatpush1.msra.mxu0 0.0
      %1694 = vmatprep.subr.mxu0 0.0
      %1695 = vmatpush1.msra.mxu0 0.0
      %1696 = vmatprep.subr.mxu0 0.0
      %1697 = vmatpush1.msra.mxu0 0.0
      %1698 = vmatprep.subr.mxu0 0.0
      %1699 = vmatpush1.msra.mxu0 0.0
      %1700 = vmatprep.subr.mxu0 0.0
      %1701 = vmatpush1.msra.mxu0 0.0
      %1702 = vmatprep.subr.mxu0 0.0
      %1703 = vmatpush1.msra.mxu0 0.0
      %1704 = vmatprep.subr.mxu0 0.0
      %1705 = vmatpush1.msra.mxu0 0.0
      %1706 = vmatprep.subr.mxu0 0.0
      %1707 = vmatpush1.msra.mxu0 %v1671
      %1708 = vmatprep.subr.mxu0 0.0
      %1709 = vmatpush1.msra.mxu0 %v1670
      %1710 = vmatprep.subr.mxu0 0.0
      %1711 = vmatpush1.msra.mxu0 %v1669
      %1712 = vmatprep.subr.mxu0 0.0
      %1713 = vmatpush1.msra.mxu0 %v1668
      %1714 = vmatprep.subr.mxu0 0.0
      %1715 = vmatpush2.msra.mxu0 0.0
      %1716 = vmatprep.subr.mxu0 0.0
      %1717 = vmatpush2.msra.mxu0 0.0
      %1718 = vmatprep.subr.mxu0 0.0
      %1719 = vmatpush2.msra.mxu0 0.0
      %1720 = vmatprep.subr.mxu0 0.0
      %1721 = vmatpush2.msra.mxu0 0.0
      %1722 = vmatprep.subr.mxu0 0.0
      %1723 = vmatpush2.msra.mxu0 0.0
      %1724 = vmatprep.subr.mxu0 0.0
      %1725 = vmatpush2.msra.mxu0 0.0
      %1726 = vmatprep.subr.mxu0 0.0
      %1727 = vmatpush2.msra.mxu0 0.0
      %1728 = vmatprep.subr.mxu0 0.0
      %1729 = vmatpush2.msra.mxu0 0.0
      %1730 = vmatprep.subr.mxu0 0.0
      %1731 = vmatpush2.msra.mxu0 0.0
      %1732 = vmatprep.subr.mxu0 0.0
      %1733 = vmatpush2.msra.mxu0 0.0
      %1734 = vmatprep.subr.mxu0 0.0
      %1735 = vmatpush2.msra.mxu0 0.0
      %1736 = vmatprep.subr.mxu0 0.0
      %1737 = vmatpush2.msra.mxu0 0.0
      %1738 = vmatprep.subr.mxu0 0.0
      %1739 = vmatpush2.msra.mxu0 0.0
      %1740 = vmatprep.subr.mxu0 0.0
      %1741 = vmatpush2.msra.mxu0 0.0
      %1742 = vmatprep.subr.mxu0 0.0
      %1743 = vmatpush2.msra.mxu0 0.0
      %1744 = vmatprep.subr.mxu0 0.0
      %1745 = vmatpush2.msra.mxu0 0.0
      %1746 = vmatprep.mubr.f32.mxu0 0.0
      %1747 = vmatmul.mubr.f32.gmra.mxu0 %v1680
      %v1748 = vpop.f32.mrf.mxu0
      %v1749 = vadd.f32 %v1677, %v1748
      %v1750 = vpop.f32.mrf.mxu0
      %1751 = vdwg.mxu0
      %v1752 = vmax.f32 %v1749, 0.0
      %v1753 = vld [vmem:[%s10] sm:$0xff]
      %v1754 = vld [vmem:[%s10 + $0x8] sm:$0xff]
      %v1755 = vld [vmem:[%s10 + $0x10] sm:$0xff]
      %v1756 = vld [vmem:[%s10 + $0x18] sm:$0xff]
      %v1757 = vld [vmem:[%s10 + $0x20] sm:$0xff]
      %v1758 = vld [vmem:[%s10 + $0x28] sm:$0xff]
      %v1759 = vld [vmem:[%s10 + $0x30] sm:$0xff]
      %v1760 = vld [vmem:[%s10 + $0x38] sm:$0xff]
      %v1761 = vld [vmem:[%s11] sm:$0x1]
      %v1763 = vlaneseq
      %v1764 = vshrl.u32 %v1763, 7
      %v1765 = vsub.s32 0, %v1764
      %v1766 = vrot.slane %v1761, %v1765
      %vm1768 = vcmask 523264
      %v1770 = vsel %vm1768, %v1752, 0
      %1772 = vmatprep.subr.mxu0 0.0
      %1773 = vmatpush1.msra.mxu0 0.0
      %1774 = vmatprep.subr.mxu0 0.0
      %1775 = vmatpush1.msra.mxu0 0.0
      %1776 = vmatprep.subr.mxu0 0.0
      %1777 = vmatpush1.msra.mxu0 0.0
      %1778 = vmatprep.subr.mxu0 0.0
      %1779 = vmatpush1.msra.mxu0 0.0
      %1780 = vmatprep.subr.mxu0 0.0
      %1781 = vmatpush1.msra.mxu0 0.0
      %1782 = vmatprep.subr.mxu0 0.0
      %1783 = vmatpush1.msra.mxu0 0.0
      %1784 = vmatprep.subr.mxu0 0.0
      %1785 = vmatpush1.msra.mxu0 0.0
      %1786 = vmatprep.subr.mxu0 0.0
      %1787 = vmatpush1.msra.mxu0 0.0
      %1788 = vmatprep.subr.mxu0 0.0
      %1789 = vmatpush1.msra.mxu0 %v1760
      %1790 = vmatprep.subr.mxu0 0.0
      %1791 = vmatpush1.msra.mxu0 %v1759
      %1792 = vmatprep.subr.mxu0 0.0
      %1793 = vmatpush1.msra.mxu0 %v1758
      %1794 = vmatprep.subr.mxu0 0.0
      %1795 = vmatpush1.msra.mxu0 %v1757
      %1796 = vmatprep.subr.mxu0 0.0
      %1797 = vmatpush1.msra.mxu0 %v1756
      %1798 = vmatprep.subr.mxu0 0.0
      %1799 = vmatpush1.msra.mxu0 %v1755
      %1800 = vmatprep.subr.mxu0 0.0
      %1801 = vmatpush1.msra.mxu0 %v1754
      %1802 = vmatprep.subr.mxu0 0.0
      %1803 = vmatpush1.msra.mxu0 %v1753
      %1804 = vmatprep.subr.mxu0 0.0
      %1805 = vmatpush2.msra.mxu0 0.0
      %1806 = vmatprep.subr.mxu0 0.0
      %1807 = vmatpush2.msra.mxu0 0.0
      %1808 = vmatprep.subr.mxu0 0.0
      %1809 = vmatpush2.msra.mxu0 0.0
      %1810 = vmatprep.subr.mxu0 0.0
      %1811 = vmatpush2.msra.mxu0 0.0
      %1812 = vmatprep.subr.mxu0 0.0
      %1813 = vmatpush2.msra.mxu0 0.0
      %1814 = vmatprep.subr.mxu0 0.0
      %1815 = vmatpush2.msra.mxu0 0.0
      %1816 = vmatprep.subr.mxu0 0.0
      %1817 = vmatpush2.msra.mxu0 0.0
      %1818 = vmatprep.subr.mxu0 0.0
      %1819 = vmatpush2.msra.mxu0 0.0
      %1820 = vmatprep.subr.mxu0 0.0
      %1821 = vmatpush2.msra.mxu0 0.0
      %1822 = vmatprep.subr.mxu0 0.0
      %1823 = vmatpush2.msra.mxu0 0.0
      %1824 = vmatprep.subr.mxu0 0.0
      %1825 = vmatpush2.msra.mxu0 0.0
      %1826 = vmatprep.subr.mxu0 0.0
      %1827 = vmatpush2.msra.mxu0 0.0
      %1828 = vmatprep.subr.mxu0 0.0
      %1829 = vmatpush2.msra.mxu0 0.0
      %1830 = vmatprep.subr.mxu0 0.0
      %1831 = vmatpush2.msra.mxu0 0.0
      %1832 = vmatprep.subr.mxu0 0.0
      %1833 = vmatpush2.msra.mxu0 0.0
      %1834 = vmatprep.subr.mxu0 0.0
      %1835 = vmatpush2.msra.mxu0 0.0
      %1836 = vmatprep.mubr.f32.mxu0 0.0
      %1837 = vmatmul.mubr.f32.gmra.mxu0 %v1770
      %v1838 = vpop.f32.mrf.mxu0
      %v1839 = vadd.f32 %v1766, %v1838
      %v1840 = vpop.f32.mrf.mxu0
      %1841 = vdwg.mxu0
      %v1842 = vadd.f32 %v1667, %v1839
      %v1843 = vld [vmem:[%s14] sm:$0x1]
      %v1844 = vld [vmem:[%s15] sm:$0x1]
      %v1845 = vsel %vm532, %v1842, 0.0
      %1846 = vadd.xlane.f32.xlu0 %v1845
      %v1847 = vpop.xlane.xlu0 %1846
      %v1848 = vmul.f32 %v1847, %v1643
      %v1849 = vsub.f32 %v1842, %v1848
      %v1850 = vmul.f32 %v1849, %v1849
      %v1851 = vsel %vm532, %v1850, 0.0
      %1852 = vadd.xlane.f32.xlu0 %v1851
      %v1853 = vpop.xlane.xlu0 %1852
      %v1854 = vmul.f32 %v1853, %v1643
      %v1855 = vadd.f32 %v1854, 1e-05
      %v1856 = vrsqrt.pop %v1855
      %v1857 = vmul.f32 %v1849, %v1856
      %v1859 = vlaneseq
      %v1860 = vshrl.u32 %v1859, 7
      %v1861 = vsub.s32 0, %v1860
      %v1862 = vrot.slane %v1843, %v1861
      %v1864 = vmul.f32 %v1857, %v1862
      %v1866 = vlaneseq
      %v1867 = vshrl.u32 %v1866, 7
      %v1868 = vsub.s32 0, %v1867
      %v1869 = vrot.slane %v1844, %v1868
      %v1871 = vadd.f32 %v1864, %v1869
      %1872 = vst.msk [vmem:[%s516] sm:$0xff] %vm532, %v1871
      %p1873 = scmp.lt.s32.totalorder %s27, 1
      %s1874 = scalar_select %p1873, %s27, 1
      %s1875 = smul.addr %s1874, 8
      %s1876 = scalar_lea.vmem %s16, %s1875
      // Predicated region
      $region85: #{transformer_forward_pallas.5} parent=83 // pred_check
        %p1877 = pneg %p386
      $region86: #{transformer_forward_pallas.5} parent=83 // pred_check_branch
        %1879 = sbr.rel (%p1877) target = $region88
      $region87: #{transformer_forward_pallas.5} parent=83 // pred_region
        _
      $region88: #{transformer_forward_pallas.5} parent=83 // pred_fallthru
        _
    $region84: #{transformer_forward_pallas.5} parent=5 // pred_fallthru
      _
    %p1880 = scmp.le.s32.totalorder 2, %s22
    // Predicated region
    $region89: #{transformer_forward_pallas.5} parent=5 // pred_check
      %p1881 = pneg %p1880
    $region90: #{transformer_forward_pallas.5} parent=5 // pred_check_branch
      %1883 = sbr.rel (%p1881) target = $region92
    $region91: #{transformer_forward_pallas.5} parent=5 // pred_region
      %s1884 = ssub.s32 %s22, 2
      // Predicated region
      $region93: #{transformer_forward_pallas.5} parent=91 // pred_check
        %p1885 = pneg %p392
      $region94: #{transformer_forward_pallas.5} parent=91 // pred_check_branch
        %1887 = sbr.rel (%p1885) target = $region96
      $region95: #{transformer_forward_pallas.5} parent=91 // pred_region
        %p1888 = scmp.lt.s32.totalorder %s28, 1
        %s1889 = scalar_select %p1888, %s28, 1
        %s1890 = smul.addr %s1889, 8
        %s1891 = scalar_lea.vmem %s16, %s1890
      $region96: #{transformer_forward_pallas.5} parent=91 // pred_fallthru
        _
    $region92: #{transformer_forward_pallas.5} parent=5 // pred_fallthru
      _
  $region6: #{transformer_forward_pallas.5} parent=0 // loop_footer
    %s26 = sadd.s32 1, %s22
  $region7: #{transformer_forward_pallas.5} parent=0 // loop_footer_branch
    %21 = sbr.rel target = $region3
  $region8: #{transformer_forward_pallas.5} parent=0 // loop_exit
    _

</llo_original>
